<compile_context>
chip_gen: v5e
topology: v5e:2x2
jax: 0.10.0
libtpu: 0.0.40
codegen_flags: <defaults>
</compile_context>

<pallas_src>
import jax
import jax.numpy as jnp
from jax.experimental import pallas as pl
from jax.experimental.pallas import tpu as pltpu


def _relu_matmul_kernel(w_ref, x_ref, o_ref):
    # ReLU on the VPU in f32, then downcast so the MXU runs native bf16 passes;
    # accumulate in f32 (preferred_element_type), store f32.
    x = jnp.maximum(x_ref[...], 0.0).astype(w_ref.dtype)
    o_ref[...] = jnp.dot(
        w_ref[...], x, preferred_element_type=jnp.float32
    ).astype(o_ref.dtype)


def _tensorcores_per_device() -> int:
    """Best-effort TensorCore count per JAX device.

    Decides whether splitting Cout across the grid buys real parallelism
    (2-TC chips) or just adds a ~0.35 us serial grid step (v5e/v6e).
    """
    try:
        info = pltpu.get_tpu_info()
        for attr in ("num_cores", "core_count", "num_tensorcores"):
            v = getattr(info, attr, None)
            if isinstance(v, int) and v >= 1:
                return v
    except Exception:
        pass
    try:
        kind = jax.devices()[0].device_kind.lower()
    except Exception:
        return 1
    if "lite" in kind or "v5e" in kind or "v6e" in kind:
        return 1  # v5e / v6e: one TensorCore per device
    if "v7" in kind or "v5p" in kind or "v5" in kind or "v4" in kind:
        return 2  # megacore (v4/v5p) and v7x: two TensorCores per device
    return 1


def relu_conv1x1(x_nchw: jax.Array, weight_oikk: jax.Array) -> jax.Array:
    """ReLU followed by Conv2d(kernel=1, stride=1, bias=False), NCHW in/out."""
    n, cin, h, w = x_nchw.shape
    cout = weight_oikk.shape[0]
    hw = n * h * w

    # NCHW -> (Cin, N*H*W). For N == 1 this is a pure reshape (no data movement).
    x_mat = jnp.transpose(x_nchw.reshape(n, cin, h * w), (1, 0, 2)).reshape(cin, hw)
    # (Cout, Cin, 1, 1) -> (Cout, Cin) and downcast to bf16: halves the dominant
    # weight HBM traffic and enables single-pass bf16 MXU matmuls.  In a real
    # model the weight would be stored bf16 (or prefetched once) so this cast
    # is free; accumulation stays f32 in-kernel.
    w_mat = weight_oikk.reshape(cout, cin).astype(jnp.bfloat16)

    # Split Cout only when there are two TensorCores to share the work.
    n_tc = _tensorcores_per_device()
    n_blk = 2 if (n_tc >= 2 and cout % 2 == 0 and (cout // 2) % 8 == 0) else 1
    blk_cout = cout // n_blk

    cost = pl.CostEstimate(
        flops=2 * cout * cin * hw,
        transcendentals=0,
        bytes_accessed=(cin * hw * 4) + (cout * cin * 2) + (cout * hw * 4),
    )

    out_mat = pl.pallas_call(
        _relu_matmul_kernel,
        out_shape=jax.ShapeDtypeStruct((cout, hw), x_nchw.dtype),
        grid=(n_blk,),
        in_specs=[
            pl.BlockSpec((blk_cout, cin), lambda i: (i, 0)),  # bf16 weight slab
            pl.BlockSpec((cin, hw), lambda i: (0, 0)),        # f32 activations, reused
        ],
        out_specs=pl.BlockSpec((blk_cout, hw), lambda i: (i, 0)),
        compiler_params=pltpu.CompilerParams(
            dimension_semantics=("parallel",)
        ),
        cost_estimate=cost,
    )(w_mat, x_mat)

    # (Cout, N*H*W) -> NCHW. Free for N == 1.
    out = out_mat.reshape(cout, n, h, w)
    return jnp.transpose(out, (1, 0, 2, 3))


if __name__ == "__main__":
    key = jax.random.PRNGKey(0)
    kx, kw = jax.random.split(key)

    # Shapes implied by the module: x [1, 256, 14, 14], weight [1024, 256, 1, 1].
    x = jax.random.normal(kx, (1, 256, 14, 14), dtype=jnp.float32)
    fan_in = 256 * 1 * 1
    bound = 1.0 / (fan_in ** 0.5)
    w = jax.random.uniform(
        kw, (1024, 256, 1, 1), minval=-bound, maxval=bound, dtype=jnp.float32
    )

    fn = jax.jit(relu_conv1x1)
    out = fn(x, w)
    jax.block_until_ready(out)
    assert out.shape == (1, 1024, 14, 14), out.shape

    # Tight check against a reference that applies the same bf16 rounding to the
    # matmul operands (f32 accumulation) — isolates kernel bugs from quantization.
    relu_x = jnp.maximum(x, 0.0)
    w2d = w.reshape(1024, 256)
    relu_x_bf = relu_x.astype(jnp.bfloat16).astype(jnp.float32)
    w_bf = w2d.astype(jnp.bfloat16).astype(jnp.float32)
    ref_bf = jnp.einsum("nchw,oc->nohw", relu_x_bf, w_bf)
    assert jnp.allclose(out, ref_bf, atol=1e-3, rtol=1e-3)

    # Loose check against the full-f32 module semantics (bf16-weight quant error).
    ref_f32 = jnp.einsum("nchw,oc->nohw", relu_x, w2d)
    assert jnp.allclose(out, ref_f32, atol=3e-2, rtol=3e-2)

    print("KERNEL_OK")
</pallas_src>

<mosaic_0001>
module attributes {stable_mosaic.version = 11 : i64} {
  func.func @_relu_matmul_kernel(%arg0: i32, %arg1: memref<1024x256xbf16, #tpu.memory_space<vmem>>, %arg2: memref<256x196xf32, #tpu.memory_space<vmem>>, %arg3: memref<1024x196xf32, #tpu.memory_space<vmem>>) attributes {dimension_semantics = [#tpu.dimension_semantics<parallel>], iteration_bounds = array<i64: 1>, scalar_prefetch = 0 : i64, scratch_operands = 0 : i64, tpu.core_type = #tpu.core_type<tc>, window_params = [{transform_indices = @transform_0, window_bounds = array<i64: 1024, 256>}, {pipeline_mode = #tpu.pipeline_mode<synchronous>, transform_indices = @transform_1, window_bounds = array<i64: 256, 196>}, {transform_indices = @transform_2, window_bounds = array<i64: 1024, 196>}]} {
    %c0 = arith.constant 0 : index
    %c0_0 = arith.constant 0 : index
    %0 = vector.load %arg2[%c0, %c0_0] : memref<256x196xf32, #tpu.memory_space<vmem>>, vector<256x196xf32>
    %cst = arith.constant 0.000000e+00 : f32
    %1 = vector.broadcast %cst : f32 to vector<256x196xf32>
    %2 = arith.maximumf %0, %1 : vector<256x196xf32>
    %3 = arith.truncf %2 : vector<256x196xf32> to vector<256x196xbf16>
    %c0_1 = arith.constant 0 : index
    %c0_2 = arith.constant 0 : index
    %4 = vector.load %arg1[%c0_1, %c0_2] : memref<1024x256xbf16, #tpu.memory_space<vmem>>, vector<1024x256xbf16>
    %cst_3 = arith.constant dense<0.000000e+00> : vector<1024x196xf32>
    %5 = tpu.matmul %4, %3, %cst_3 {dimension_numbers = #tpu.dot_dimension_numbers<[1], [0], [0], [1], [0, 0, 1, 1], [], []>} : vector<1024x256xbf16>, vector<256x196xbf16>, vector<1024x196xf32> -> vector<1024x196xf32>
    %c0_4 = arith.constant 0 : index
    %c0_5 = arith.constant 0 : index
    %6 = vector.load %arg3[%c0_4, %c0_5] : memref<1024x196xf32, #tpu.memory_space<vmem>>, vector<1024x196xf32>
    tpu.vector_store %arg3[%c0_4, %c0_5], %5 {strides = array<i32>} : memref<1024x196xf32, #tpu.memory_space<vmem>>, vector<1024x196xf32>,
    return
  }
  func.func @transform_0(%arg0: i32) -> (i32, i32) {
    %c0_i32 = arith.constant 0 : i32
    %c0_i32_0 = arith.constant 0 : i32
    return %arg0, %c0_i32 : i32, i32
  }
  func.func @transform_1(%arg0: i32) -> (i32, i32) {
    %c0_i32 = arith.constant 0 : i32
    %c0_i32_0 = arith.constant 0 : i32
    %c0_i32_1 = arith.constant 0 : i32
    return %c0_i32, %c0_i32_0 : i32, i32
  }
  func.func @transform_2(%arg0: i32) -> (i32, i32) {
    %c0_i32 = arith.constant 0 : i32
    %c0_i32_0 = arith.constant 0 : i32
    return %arg0, %c0_i32 : i32, i32
  }
}

</mosaic_0001>

<llo_original>
// kernel: relu_conv1x1.1
$region0: #{relu_conv1x1.1}
  #allocation0 [shape = 'u32[]', space=smem, size = 0x4, offset = 0x4, fixed_abs, tag = 'smem constant byte address 0x4 - core index']
  #allocation1 [shape = 'u32[72,128]{1,0:T(1,128)}', space=vmem, size = 0x9000, scoped, tag = 'internal scratch']
  %s0 = inlined_call_operand.vmem [shape: bf16[1024,256], index: 0, kind: input, shape index: {}]
  %s1 = inlined_call_operand.vmem [shape: f32[256,196], index: 1, kind: input, shape index: {}]
  %s2 = inlined_call_operand.vmem [shape: f32[1024,196], index: 2, kind: output, shape index: {}]
  %s3 = sld [smem:[#allocation0]]
  $region18: #{relu_conv1x1.1} parent=0
    _
  %s5 = ssub.s32 1, %s3
  %s6 = scalar_select 0, %s5, %s3
  // Predicated region
  $region2: #{relu_conv1x1.1} parent=0 // pred_check
    _
  $region3: #{relu_conv1x1.1} parent=0 // pred_check_branch
    %8 = sbr.rel (0) target = $region5
  $region4: #{relu_conv1x1.1} parent=0 // pred_region
    _
  $region5: #{relu_conv1x1.1} parent=0 // pred_fallthru
    _
  // Predicated region
  $region6: #{relu_conv1x1.1} parent=0 // pred_check
    _
  $region7: #{relu_conv1x1.1} parent=0 // pred_check_branch
    %10 = sbr.rel (0) target = $region9
  $region8: #{relu_conv1x1.1} parent=0 // pred_region
    _
  $region9: #{relu_conv1x1.1} parent=0 // pred_fallthru
    _
  %v11 = vld [vmem:[%s1] sm:$0xff]
  %v12 = vld [vmem:[%s1 + $0x8] sm:$0xff]
  %v13 = vld [vmem:[%s1 + $0x10] sm:$0xff]
  %v14 = vld [vmem:[%s1 + $0x18] sm:$0xff]
  %v15 = vld [vmem:[%s1 + $0x20] sm:$0xff]
  %v16 = vld [vmem:[%s1 + $0x28] sm:$0xff]
  %v17 = vld [vmem:[%s1 + $0x30] sm:$0xff]
  %v18 = vld [vmem:[%s1 + $0x38] sm:$0xff]
  %v19 = vld [vmem:[%s1 + $0x40] sm:$0xff]
  %v20 = vld [vmem:[%s1 + $0x48] sm:$0xff]
  %v21 = vld [vmem:[%s1 + $0x50] sm:$0xff]
  %v22 = vld [vmem:[%s1 + $0x58] sm:$0xff]
  %v23 = vld [vmem:[%s1 + $0x60] sm:$0xff]
  %v24 = vld [vmem:[%s1 + $0x68] sm:$0xff]
  %v25 = vld [vmem:[%s1 + $0x70] sm:$0xff]
  %v26 = vld [vmem:[%s1 + $0x78] sm:$0xff]
  %v27 = vld [vmem:[%s1 + $0x80] sm:$0xff]
  %v28 = vld [vmem:[%s1 + $0x88] sm:$0xff]
  %v29 = vld [vmem:[%s1 + $0x90] sm:$0xff]
  %v30 = vld [vmem:[%s1 + $0x98] sm:$0xff]
  %v31 = vld [vmem:[%s1 + $0xa0] sm:$0xff]
  %v32 = vld [vmem:[%s1 + $0xa8] sm:$0xff]
  %v33 = vld [vmem:[%s1 + $0xb0] sm:$0xff]
  %v34 = vld [vmem:[%s1 + $0xb8] sm:$0xff]
  %v35 = vld [vmem:[%s1 + $0xc0] sm:$0xff]
  %v36 = vld [vmem:[%s1 + $0xc8] sm:$0xff]
  %v37 = vld [vmem:[%s1 + $0xd0] sm:$0xff]
  %v38 = vld [vmem:[%s1 + $0xd8] sm:$0xff]
  %v39 = vld [vmem:[%s1 + $0xe0] sm:$0xff]
  %v40 = vld [vmem:[%s1 + $0xe8] sm:$0xff]
  %v41 = vld [vmem:[%s1 + $0xf0] sm:$0xff]
  %v42 = vld [vmem:[%s1 + $0xf8] sm:$0xff]
  %v43 = vld [vmem:[%s1 + $0x100] sm:$0xff]
  %v44 = vld [vmem:[%s1 + $0x108] sm:$0xff]
  %v45 = vld [vmem:[%s1 + $0x110] sm:$0xff]
  %v46 = vld [vmem:[%s1 + $0x118] sm:$0xff]
  %v47 = vld [vmem:[%s1 + $0x120] sm:$0xff]
  %v48 = vld [vmem:[%s1 + $0x128] sm:$0xff]
  %v49 = vld [vmem:[%s1 + $0x130] sm:$0xff]
  %v50 = vld [vmem:[%s1 + $0x138] sm:$0xff]
  %v51 = vld [vmem:[%s1 + $0x140] sm:$0xff]
  %v52 = vld [vmem:[%s1 + $0x148] sm:$0xff]
  %v53 = vld [vmem:[%s1 + $0x150] sm:$0xff]
  %v54 = vld [vmem:[%s1 + $0x158] sm:$0xff]
  %v55 = vld [vmem:[%s1 + $0x160] sm:$0xff]
  %v56 = vld [vmem:[%s1 + $0x168] sm:$0xff]
  %v57 = vld [vmem:[%s1 + $0x170] sm:$0xff]
  %v58 = vld [vmem:[%s1 + $0x178] sm:$0xff]
  %v59 = vld [vmem:[%s1 + $0x180] sm:$0xff]
  %v60 = vld [vmem:[%s1 + $0x188] sm:$0xff]
  %v61 = vld [vmem:[%s1 + $0x190] sm:$0xff]
  %v62 = vld [vmem:[%s1 + $0x198] sm:$0xff]
  %v63 = vld [vmem:[%s1 + $0x1a0] sm:$0xff]
  %v64 = vld [vmem:[%s1 + $0x1a8] sm:$0xff]
  %v65 = vld [vmem:[%s1 + $0x1b0] sm:$0xff]
  %v66 = vld [vmem:[%s1 + $0x1b8] sm:$0xff]
  %v67 = vld [vmem:[%s1 + $0x1c0] sm:$0xff]
  %v68 = vld [vmem:[%s1 + $0x1c8] sm:$0xff]
  %v69 = vld [vmem:[%s1 + $0x1d0] sm:$0xff]
  %v70 = vld [vmem:[%s1 + $0x1d8] sm:$0xff]
  %v71 = vld [vmem:[%s1 + $0x1e0] sm:$0xff]
  %v72 = vld [vmem:[%s1 + $0x1e8] sm:$0xff]
  %v73 = vld [vmem:[%s1 + $0x1f0] sm:$0xff]
  %v74 = vld [vmem:[%s1 + $0x1f8] sm:$0xff]
  %v75 = vmax.f32 %v11, 0.0
  %v76 = vmax.f32 %v12, 0.0
  %v77 = vmax.f32 %v13, 0.0
  %v78 = vmax.f32 %v14, 0.0
  %v79 = vmax.f32 %v15, 0.0
  %v80 = vmax.f32 %v16, 0.0
  %v81 = vmax.f32 %v17, 0.0
  %v82 = vmax.f32 %v18, 0.0
  %v83 = vmax.f32 %v19, 0.0
  %v84 = vmax.f32 %v20, 0.0
  %v85 = vmax.f32 %v21, 0.0
  %v86 = vmax.f32 %v22, 0.0
  %v87 = vmax.f32 %v23, 0.0
  %v88 = vmax.f32 %v24, 0.0
  %v89 = vmax.f32 %v25, 0.0
  %v90 = vmax.f32 %v26, 0.0
  %v91 = vmax.f32 %v27, 0.0
  %v92 = vmax.f32 %v28, 0.0
  %v93 = vmax.f32 %v29, 0.0
  %v94 = vmax.f32 %v30, 0.0
  %v95 = vmax.f32 %v31, 0.0
  %v96 = vmax.f32 %v32, 0.0
  %v97 = vmax.f32 %v33, 0.0
  %v98 = vmax.f32 %v34, 0.0
  %v99 = vmax.f32 %v35, 0.0
  %v100 = vmax.f32 %v36, 0.0
  %v101 = vmax.f32 %v37, 0.0
  %v102 = vmax.f32 %v38, 0.0
  %v103 = vmax.f32 %v39, 0.0
  %v104 = vmax.f32 %v40, 0.0
  %v105 = vmax.f32 %v41, 0.0
  %v106 = vmax.f32 %v42, 0.0
  %v107 = vmax.f32 %v43, 0.0
  %v108 = vmax.f32 %v44, 0.0
  %v109 = vmax.f32 %v45, 0.0
  %v110 = vmax.f32 %v46, 0.0
  %v111 = vmax.f32 %v47, 0.0
  %v112 = vmax.f32 %v48, 0.0
  %v113 = vmax.f32 %v49, 0.0
  %v114 = vmax.f32 %v50, 0.0
  %v115 = vmax.f32 %v51, 0.0
  %v116 = vmax.f32 %v52, 0.0
  %v117 = vmax.f32 %v53, 0.0
  %v118 = vmax.f32 %v54, 0.0
  %v119 = vmax.f32 %v55, 0.0
  %v120 = vmax.f32 %v56, 0.0
  %v121 = vmax.f32 %v57, 0.0
  %v122 = vmax.f32 %v58, 0.0
  %v123 = vmax.f32 %v59, 0.0
  %v124 = vmax.f32 %v60, 0.0
  %v125 = vmax.f32 %v61, 0.0
  %v126 = vmax.f32 %v62, 0.0
  %v127 = vmax.f32 %v63, 0.0
  %v128 = vmax.f32 %v64, 0.0
  %v129 = vmax.f32 %v65, 0.0
  %v130 = vmax.f32 %v66, 0.0
  %v131 = vmax.f32 %v67, 0.0
  %v132 = vmax.f32 %v68, 0.0
  %v133 = vmax.f32 %v69, 0.0
  %v134 = vmax.f32 %v70, 0.0
  %v135 = vmax.f32 %v71, 0.0
  %v136 = vmax.f32 %v72, 0.0
  %v137 = vmax.f32 %v73, 0.0
  %v138 = vmax.f32 %v74, 0.0
  %v139 = vpack.c.bf16 %v77, %v75
  %v140 = vpack.c.bf16 %v78, %v76
  %v141 = vpack.c.bf16 %v81, %v79
  %v142 = vpack.c.bf16 %v82, %v80
  %v143 = vpack.c.bf16 %v85, %v83
  %v144 = vpack.c.bf16 %v86, %v84
  %v145 = vpack.c.bf16 %v89, %v87
  %v146 = vpack.c.bf16 %v90, %v88
  %v147 = vpack.c.bf16 %v93, %v91
  %v148 = vpack.c.bf16 %v94, %v92
  %v149 = vpack.c.bf16 %v97, %v95
  %v150 = vpack.c.bf16 %v98, %v96
  %v151 = vpack.c.bf16 %v101, %v99
  %v152 = vpack.c.bf16 %v102, %v100
  %v153 = vpack.c.bf16 %v105, %v103
  %v154 = vpack.c.bf16 %v106, %v104
  %v155 = vpack.c.bf16 %v109, %v107
  %v156 = vpack.c.bf16 %v110, %v108
  %v157 = vpack.c.bf16 %v113, %v111
  %v158 = vpack.c.bf16 %v114, %v112
  %v159 = vpack.c.bf16 %v117, %v115
  %v160 = vpack.c.bf16 %v118, %v116
  %v161 = vpack.c.bf16 %v121, %v119
  %v162 = vpack.c.bf16 %v122, %v120
  %v163 = vpack.c.bf16 %v125, %v123
  %v164 = vpack.c.bf16 %v126, %v124
  %v165 = vpack.c.bf16 %v129, %v127
  %v166 = vpack.c.bf16 %v130, %v128
  %v167 = vpack.c.bf16 %v133, %v131
  %v168 = vpack.c.bf16 %v134, %v132
  %v169 = vpack.c.bf16 %v137, %v135
  %v170 = vpack.c.bf16 %v138, %v136
  %v171 = vld [vmem:[%s0] sm:$0xff]
  %v172 = vld [vmem:[%s0 + $0x8] sm:$0xff]
  %v173 = vld [vmem:[%s0 + $0x10] sm:$0xff]
  %v174 = vld [vmem:[%s0 + $0x18] sm:$0xff]
  %v175 = vld [vmem:[%s0 + $0x20] sm:$0xff]
  %v176 = vld [vmem:[%s0 + $0x28] sm:$0xff]
  %v177 = vld [vmem:[%s0 + $0x30] sm:$0xff]
  %v178 = vld [vmem:[%s0 + $0x38] sm:$0xff]
  %v179 = vld [vmem:[%s0 + $0x40] sm:$0xff]
  %v180 = vld [vmem:[%s0 + $0x48] sm:$0xff]
  %v181 = vld [vmem:[%s0 + $0x50] sm:$0xff]
  %v182 = vld [vmem:[%s0 + $0x58] sm:$0xff]
  %v183 = vld [vmem:[%s0 + $0x60] sm:$0xff]
  %v184 = vld [vmem:[%s0 + $0x68] sm:$0xff]
  %v185 = vld [vmem:[%s0 + $0x70] sm:$0xff]
  %v186 = vld [vmem:[%s0 + $0x78] sm:$0xff]
  %v187 = vld [vmem:[%s0 + $0x80] sm:$0xff]
  %v188 = vld [vmem:[%s0 + $0x88] sm:$0xff]
  %v189 = vld [vmem:[%s0 + $0x90] sm:$0xff]
  %v190 = vld [vmem:[%s0 + $0x98] sm:$0xff]
  %v191 = vld [vmem:[%s0 + $0xa0] sm:$0xff]
  %v192 = vld [vmem:[%s0 + $0xa8] sm:$0xff]
  %v193 = vld [vmem:[%s0 + $0xb0] sm:$0xff]
  %v194 = vld [vmem:[%s0 + $0xb8] sm:$0xff]
  %v195 = vld [vmem:[%s0 + $0xc0] sm:$0xff]
  %v196 = vld [vmem:[%s0 + $0xc8] sm:$0xff]
  %v197 = vld [vmem:[%s0 + $0xd0] sm:$0xff]
  %v198 = vld [vmem:[%s0 + $0xd8] sm:$0xff]
  %v199 = vld [vmem:[%s0 + $0xe0] sm:$0xff]
  %v200 = vld [vmem:[%s0 + $0xe8] sm:$0xff]
  %v201 = vld [vmem:[%s0 + $0xf0] sm:$0xff]
  %v202 = vld [vmem:[%s0 + $0xf8] sm:$0xff]
  %v203 = vld [vmem:[%s0 + $0x100] sm:$0xff]
  %v204 = vld [vmem:[%s0 + $0x108] sm:$0xff]
  %v205 = vld [vmem:[%s0 + $0x110] sm:$0xff]
  %v206 = vld [vmem:[%s0 + $0x118] sm:$0xff]
  %v207 = vld [vmem:[%s0 + $0x120] sm:$0xff]
  %v208 = vld [vmem:[%s0 + $0x128] sm:$0xff]
  %v209 = vld [vmem:[%s0 + $0x130] sm:$0xff]
  %v210 = vld [vmem:[%s0 + $0x138] sm:$0xff]
  %v211 = vld [vmem:[%s0 + $0x140] sm:$0xff]
  %v212 = vld [vmem:[%s0 + $0x148] sm:$0xff]
  %v213 = vld [vmem:[%s0 + $0x150] sm:$0xff]
  %v214 = vld [vmem:[%s0 + $0x158] sm:$0xff]
  %v215 = vld [vmem:[%s0 + $0x160] sm:$0xff]
  %v216 = vld [vmem:[%s0 + $0x168] sm:$0xff]
  %v217 = vld [vmem:[%s0 + $0x170] sm:$0xff]
  %v218 = vld [vmem:[%s0 + $0x178] sm:$0xff]
  %v219 = vld [vmem:[%s0 + $0x180] sm:$0xff]
  %v220 = vld [vmem:[%s0 + $0x188] sm:$0xff]
  %v221 = vld [vmem:[%s0 + $0x190] sm:$0xff]
  %v222 = vld [vmem:[%s0 + $0x198] sm:$0xff]
  %v223 = vld [vmem:[%s0 + $0x1a0] sm:$0xff]
  %v224 = vld [vmem:[%s0 + $0x1a8] sm:$0xff]
  %v225 = vld [vmem:[%s0 + $0x1b0] sm:$0xff]
  %v226 = vld [vmem:[%s0 + $0x1b8] sm:$0xff]
  %v227 = vld [vmem:[%s0 + $0x1c0] sm:$0xff]
  %v228 = vld [vmem:[%s0 + $0x1c8] sm:$0xff]
  %v229 = vld [vmem:[%s0 + $0x1d0] sm:$0xff]
  %v230 = vld [vmem:[%s0 + $0x1d8] sm:$0xff]
  %v231 = vld [vmem:[%s0 + $0x1e0] sm:$0xff]
  %v232 = vld [vmem:[%s0 + $0x1e8] sm:$0xff]
  %v233 = vld [vmem:[%s0 + $0x1f0] sm:$0xff]
  %v234 = vld [vmem:[%s0 + $0x1f8] sm:$0xff]
  %v235 = vld [vmem:[%s0 + $0x200] sm:$0xff]
  %v236 = vld [vmem:[%s0 + $0x208] sm:$0xff]
  %v237 = vld [vmem:[%s0 + $0x210] sm:$0xff]
  %v238 = vld [vmem:[%s0 + $0x218] sm:$0xff]
  %v239 = vld [vmem:[%s0 + $0x220] sm:$0xff]
  %v240 = vld [vmem:[%s0 + $0x228] sm:$0xff]
  %v241 = vld [vmem:[%s0 + $0x230] sm:$0xff]
  %v242 = vld [vmem:[%s0 + $0x238] sm:$0xff]
  %v243 = vld [vmem:[%s0 + $0x240] sm:$0xff]
  %v244 = vld [vmem:[%s0 + $0x248] sm:$0xff]
  %v245 = vld [vmem:[%s0 + $0x250] sm:$0xff]
  %v246 = vld [vmem:[%s0 + $0x258] sm:$0xff]
  %v247 = vld [vmem:[%s0 + $0x260] sm:$0xff]
  %v248 = vld [vmem:[%s0 + $0x268] sm:$0xff]
  %v249 = vld [vmem:[%s0 + $0x270] sm:$0xff]
  %v250 = vld [vmem:[%s0 + $0x278] sm:$0xff]
  %v251 = vld [vmem:[%s0 + $0x280] sm:$0xff]
  %v252 = vld [vmem:[%s0 + $0x288] sm:$0xff]
  %v253 = vld [vmem:[%s0 + $0x290] sm:$0xff]
  %v254 = vld [vmem:[%s0 + $0x298] sm:$0xff]
  %v255 = vld [vmem:[%s0 + $0x2a0] sm:$0xff]
  %v256 = vld [vmem:[%s0 + $0x2a8] sm:$0xff]
  %v257 = vld [vmem:[%s0 + $0x2b0] sm:$0xff]
  %v258 = vld [vmem:[%s0 + $0x2b8] sm:$0xff]
  %v259 = vld [vmem:[%s0 + $0x2c0] sm:$0xff]
  %v260 = vld [vmem:[%s0 + $0x2c8] sm:$0xff]
  %v261 = vld [vmem:[%s0 + $0x2d0] sm:$0xff]
  %v262 = vld [vmem:[%s0 + $0x2d8] sm:$0xff]
  %v263 = vld [vmem:[%s0 + $0x2e0] sm:$0xff]
  %v264 = vld [vmem:[%s0 + $0x2e8] sm:$0xff]
  %v265 = vld [vmem:[%s0 + $0x2f0] sm:$0xff]
  %v266 = vld [vmem:[%s0 + $0x2f8] sm:$0xff]
  %v267 = vld [vmem:[%s0 + $0x300] sm:$0xff]
  %v268 = vld [vmem:[%s0 + $0x308] sm:$0xff]
  %v269 = vld [vmem:[%s0 + $0x310] sm:$0xff]
  %v270 = vld [vmem:[%s0 + $0x318] sm:$0xff]
  %v271 = vld [vmem:[%s0 + $0x320] sm:$0xff]
  %v272 = vld [vmem:[%s0 + $0x328] sm:$0xff]
  %v273 = vld [vmem:[%s0 + $0x330] sm:$0xff]
  %v274 = vld [vmem:[%s0 + $0x338] sm:$0xff]
  %v275 = vld [vmem:[%s0 + $0x340] sm:$0xff]
  %v276 = vld [vmem:[%s0 + $0x348] sm:$0xff]
  %v277 = vld [vmem:[%s0 + $0x350] sm:$0xff]
  %v278 = vld [vmem:[%s0 + $0x358] sm:$0xff]
  %v279 = vld [vmem:[%s0 + $0x360] sm:$0xff]
  %v280 = vld [vmem:[%s0 + $0x368] sm:$0xff]
  %v281 = vld [vmem:[%s0 + $0x370] sm:$0xff]
  %v282 = vld [vmem:[%s0 + $0x378] sm:$0xff]
  %v283 = vld [vmem:[%s0 + $0x380] sm:$0xff]
  %v284 = vld [vmem:[%s0 + $0x388] sm:$0xff]
  %v285 = vld [vmem:[%s0 + $0x390] sm:$0xff]
  %v286 = vld [vmem:[%s0 + $0x398] sm:$0xff]
  %v287 = vld [vmem:[%s0 + $0x3a0] sm:$0xff]
  %v288 = vld [vmem:[%s0 + $0x3a8] sm:$0xff]
  %v289 = vld [vmem:[%s0 + $0x3b0] sm:$0xff]
  %v290 = vld [vmem:[%s0 + $0x3b8] sm:$0xff]
  %v291 = vld [vmem:[%s0 + $0x3c0] sm:$0xff]
  %v292 = vld [vmem:[%s0 + $0x3c8] sm:$0xff]
  %v293 = vld [vmem:[%s0 + $0x3d0] sm:$0xff]
  %v294 = vld [vmem:[%s0 + $0x3d8] sm:$0xff]
  %v295 = vld [vmem:[%s0 + $0x3e0] sm:$0xff]
  %v296 = vld [vmem:[%s0 + $0x3e8] sm:$0xff]
  %v297 = vld [vmem:[%s0 + $0x3f0] sm:$0xff]
  %v298 = vld [vmem:[%s0 + $0x3f8] sm:$0xff]
  %v427 = vunpack.c.l.b16 %v171
  %v428 = vunpack.c.h.b16 %v171
  %v429 = vunpack.c.l.b16 %v172
  %v430 = vunpack.c.h.b16 %v172
  %v431 = vunpack.c.l.b16 %v173
  %v432 = vunpack.c.h.b16 %v173
  %v433 = vunpack.c.l.b16 %v174
  %v434 = vunpack.c.h.b16 %v174
  %v435 = vunpack.c.l.b16 %v175
  %v436 = vunpack.c.h.b16 %v175
  %v437 = vunpack.c.l.b16 %v176
  %v438 = vunpack.c.h.b16 %v176
  %v439 = vunpack.c.l.b16 %v177
  %v440 = vunpack.c.h.b16 %v177
  %v441 = vunpack.c.l.b16 %v178
  %v442 = vunpack.c.h.b16 %v178
  %v443 = vunpack.c.l.b16 %v179
  %v444 = vunpack.c.h.b16 %v179
  %v445 = vunpack.c.l.b16 %v180
  %v446 = vunpack.c.h.b16 %v180
  %v447 = vunpack.c.l.b16 %v181
  %v448 = vunpack.c.h.b16 %v181
  %v449 = vunpack.c.l.b16 %v182
  %v450 = vunpack.c.h.b16 %v182
  %v451 = vunpack.c.l.b16 %v183
  %v452 = vunpack.c.h.b16 %v183
  %v453 = vunpack.c.l.b16 %v184
  %v454 = vunpack.c.h.b16 %v184
  %v455 = vunpack.c.l.b16 %v185
  %v456 = vunpack.c.h.b16 %v185
  %v457 = vunpack.c.l.b16 %v186
  %v458 = vunpack.c.h.b16 %v186
  %v459 = vunpack.c.l.b16 %v187
  %v460 = vunpack.c.h.b16 %v187
  %v461 = vunpack.c.l.b16 %v188
  %v462 = vunpack.c.h.b16 %v188
  %v463 = vunpack.c.l.b16 %v189
  %v464 = vunpack.c.h.b16 %v189
  %v465 = vunpack.c.l.b16 %v190
  %v466 = vunpack.c.h.b16 %v190
  %v467 = vunpack.c.l.b16 %v191
  %v468 = vunpack.c.h.b16 %v191
  %v469 = vunpack.c.l.b16 %v192
  %v470 = vunpack.c.h.b16 %v192
  %v471 = vunpack.c.l.b16 %v193
  %v472 = vunpack.c.h.b16 %v193
  %v473 = vunpack.c.l.b16 %v194
  %v474 = vunpack.c.h.b16 %v194
  %v475 = vunpack.c.l.b16 %v195
  %v476 = vunpack.c.h.b16 %v195
  %v477 = vunpack.c.l.b16 %v196
  %v478 = vunpack.c.h.b16 %v196
  %v479 = vunpack.c.l.b16 %v197
  %v480 = vunpack.c.h.b16 %v197
  %v481 = vunpack.c.l.b16 %v198
  %v482 = vunpack.c.h.b16 %v198
  %v483 = vunpack.c.l.b16 %v199
  %v484 = vunpack.c.h.b16 %v199
  %v485 = vunpack.c.l.b16 %v200
  %v486 = vunpack.c.h.b16 %v200
  %v487 = vunpack.c.l.b16 %v201
  %v488 = vunpack.c.h.b16 %v201
  %v489 = vunpack.c.l.b16 %v202
  %v490 = vunpack.c.h.b16 %v202
  %v491 = vunpack.c.l.b16 %v203
  %v492 = vunpack.c.h.b16 %v203
  %v493 = vunpack.c.l.b16 %v204
  %v494 = vunpack.c.h.b16 %v204
  %v495 = vunpack.c.l.b16 %v205
  %v496 = vunpack.c.h.b16 %v205
  %v497 = vunpack.c.l.b16 %v206
  %v498 = vunpack.c.h.b16 %v206
  %v499 = vunpack.c.l.b16 %v207
  %v500 = vunpack.c.h.b16 %v207
  %v501 = vunpack.c.l.b16 %v208
  %v502 = vunpack.c.h.b16 %v208
  %v503 = vunpack.c.l.b16 %v209
  %v504 = vunpack.c.h.b16 %v209
  %v505 = vunpack.c.l.b16 %v210
  %v506 = vunpack.c.h.b16 %v210
  %v507 = vunpack.c.l.b16 %v211
  %v508 = vunpack.c.h.b16 %v211
  %v509 = vunpack.c.l.b16 %v212
  %v510 = vunpack.c.h.b16 %v212
  %v511 = vunpack.c.l.b16 %v213
  %v512 = vunpack.c.h.b16 %v213
  %v513 = vunpack.c.l.b16 %v214
  %v514 = vunpack.c.h.b16 %v214
  %v515 = vunpack.c.l.b16 %v215
  %v516 = vunpack.c.h.b16 %v215
  %v517 = vunpack.c.l.b16 %v216
  %v518 = vunpack.c.h.b16 %v216
  %v519 = vunpack.c.l.b16 %v217
  %v520 = vunpack.c.h.b16 %v217
  %v521 = vunpack.c.l.b16 %v218
  %v522 = vunpack.c.h.b16 %v218
  %v523 = vunpack.c.l.b16 %v219
  %v524 = vunpack.c.h.b16 %v219
  %v525 = vunpack.c.l.b16 %v220
  %v526 = vunpack.c.h.b16 %v220
  %v527 = vunpack.c.l.b16 %v221
  %v528 = vunpack.c.h.b16 %v221
  %v529 = vunpack.c.l.b16 %v222
  %v530 = vunpack.c.h.b16 %v222
  %v531 = vunpack.c.l.b16 %v223
  %v532 = vunpack.c.h.b16 %v223
  %v533 = vunpack.c.l.b16 %v224
  %v534 = vunpack.c.h.b16 %v224
  %v535 = vunpack.c.l.b16 %v225
  %v536 = vunpack.c.h.b16 %v225
  %v537 = vunpack.c.l.b16 %v226
  %v538 = vunpack.c.h.b16 %v226
  %v539 = vunpack.c.l.b16 %v227
  %v540 = vunpack.c.h.b16 %v227
  %v541 = vunpack.c.l.b16 %v228
  %v542 = vunpack.c.h.b16 %v228
  %v543 = vunpack.c.l.b16 %v229
  %v544 = vunpack.c.h.b16 %v229
  %v545 = vunpack.c.l.b16 %v230
  %v546 = vunpack.c.h.b16 %v230
  %v547 = vunpack.c.l.b16 %v231
  %v548 = vunpack.c.h.b16 %v231
  %v549 = vunpack.c.l.b16 %v232
  %v550 = vunpack.c.h.b16 %v232
  %v551 = vunpack.c.l.b16 %v233
  %v552 = vunpack.c.h.b16 %v233
  %v553 = vunpack.c.l.b16 %v234
  %v554 = vunpack.c.h.b16 %v234
  %v555 = vunpack.c.l.b16 %v235
  %v556 = vunpack.c.h.b16 %v235
  %v557 = vunpack.c.l.b16 %v236
  %v558 = vunpack.c.h.b16 %v236
  %v559 = vunpack.c.l.b16 %v237
  %v560 = vunpack.c.h.b16 %v237
  %v561 = vunpack.c.l.b16 %v238
  %v562 = vunpack.c.h.b16 %v238
  %v563 = vunpack.c.l.b16 %v239
  %v564 = vunpack.c.h.b16 %v239
  %v565 = vunpack.c.l.b16 %v240
  %v566 = vunpack.c.h.b16 %v240
  %v567 = vunpack.c.l.b16 %v241
  %v568 = vunpack.c.h.b16 %v241
  %v569 = vunpack.c.l.b16 %v242
  %v570 = vunpack.c.h.b16 %v242
  %v571 = vunpack.c.l.b16 %v243
  %v572 = vunpack.c.h.b16 %v243
  %v573 = vunpack.c.l.b16 %v244
  %v574 = vunpack.c.h.b16 %v244
  %v575 = vunpack.c.l.b16 %v245
  %v576 = vunpack.c.h.b16 %v245
  %v577 = vunpack.c.l.b16 %v246
  %v578 = vunpack.c.h.b16 %v246
  %v579 = vunpack.c.l.b16 %v247
  %v580 = vunpack.c.h.b16 %v247
  %v581 = vunpack.c.l.b16 %v248
  %v582 = vunpack.c.h.b16 %v248
  %v583 = vunpack.c.l.b16 %v249
  %v584 = vunpack.c.h.b16 %v249
  %v585 = vunpack.c.l.b16 %v250
  %v586 = vunpack.c.h.b16 %v250
  %v587 = vunpack.c.l.b16 %v251
  %v588 = vunpack.c.h.b16 %v251
  %v589 = vunpack.c.l.b16 %v252
  %v590 = vunpack.c.h.b16 %v252
  %v591 = vunpack.c.l.b16 %v253
  %v592 = vunpack.c.h.b16 %v253
  %v593 = vunpack.c.l.b16 %v254
  %v594 = vunpack.c.h.b16 %v254
  %v595 = vunpack.c.l.b16 %v255
  %v596 = vunpack.c.h.b16 %v255
  %v597 = vunpack.c.l.b16 %v256
  %v598 = vunpack.c.h.b16 %v256
  %v599 = vunpack.c.l.b16 %v257
  %v600 = vunpack.c.h.b16 %v257
  %v601 = vunpack.c.l.b16 %v258
  %v602 = vunpack.c.h.b16 %v258
  %v603 = vunpack.c.l.b16 %v259
  %v604 = vunpack.c.h.b16 %v259
  %v605 = vunpack.c.l.b16 %v260
  %v606 = vunpack.c.h.b16 %v260
  %v607 = vunpack.c.l.b16 %v261
  %v608 = vunpack.c.h.b16 %v261
  %v609 = vunpack.c.l.b16 %v262
  %v610 = vunpack.c.h.b16 %v262
  %v611 = vunpack.c.l.b16 %v263
  %v612 = vunpack.c.h.b16 %v263
  %v613 = vunpack.c.l.b16 %v264
  %v614 = vunpack.c.h.b16 %v264
  %v615 = vunpack.c.l.b16 %v265
  %v616 = vunpack.c.h.b16 %v265
  %v617 = vunpack.c.l.b16 %v266
  %v618 = vunpack.c.h.b16 %v266
  %v619 = vunpack.c.l.b16 %v267
  %v620 = vunpack.c.h.b16 %v267
  %v621 = vunpack.c.l.b16 %v268
  %v622 = vunpack.c.h.b16 %v268
  %v623 = vunpack.c.l.b16 %v269
  %v624 = vunpack.c.h.b16 %v269
  %v625 = vunpack.c.l.b16 %v270
  %v626 = vunpack.c.h.b16 %v270
  %v627 = vunpack.c.l.b16 %v271
  %v628 = vunpack.c.h.b16 %v271
  %v629 = vunpack.c.l.b16 %v272
  %v630 = vunpack.c.h.b16 %v272
  %v631 = vunpack.c.l.b16 %v273
  %v632 = vunpack.c.h.b16 %v273
  %v633 = vunpack.c.l.b16 %v274
  %v634 = vunpack.c.h.b16 %v274
  %v635 = vunpack.c.l.b16 %v275
  %v636 = vunpack.c.h.b16 %v275
  %v637 = vunpack.c.l.b16 %v276
  %v638 = vunpack.c.h.b16 %v276
  %v639 = vunpack.c.l.b16 %v277
  %v640 = vunpack.c.h.b16 %v277
  %v641 = vunpack.c.l.b16 %v278
  %v642 = vunpack.c.h.b16 %v278
  %v643 = vunpack.c.l.b16 %v279
  %v644 = vunpack.c.h.b16 %v279
  %v645 = vunpack.c.l.b16 %v280
  %v646 = vunpack.c.h.b16 %v280
  %v647 = vunpack.c.l.b16 %v281
  %v648 = vunpack.c.h.b16 %v281
  %v649 = vunpack.c.l.b16 %v282
  %v650 = vunpack.c.h.b16 %v282
  %v651 = vunpack.c.l.b16 %v283
  %v652 = vunpack.c.h.b16 %v283
  %v653 = vunpack.c.l.b16 %v284
  %v654 = vunpack.c.h.b16 %v284
  %v655 = vunpack.c.l.b16 %v285
  %v656 = vunpack.c.h.b16 %v285
  %v657 = vunpack.c.l.b16 %v286
  %v658 = vunpack.c.h.b16 %v286
  %v659 = vunpack.c.l.b16 %v287
  %v660 = vunpack.c.h.b16 %v287
  %v661 = vunpack.c.l.b16 %v288
  %v662 = vunpack.c.h.b16 %v288
  %v663 = vunpack.c.l.b16 %v289
  %v664 = vunpack.c.h.b16 %v289
  %v665 = vunpack.c.l.b16 %v290
  %v666 = vunpack.c.h.b16 %v290
  %v667 = vunpack.c.l.b16 %v291
  %v668 = vunpack.c.h.b16 %v291
  %v669 = vunpack.c.l.b16 %v292
  %v670 = vunpack.c.h.b16 %v292
  %v671 = vunpack.c.l.b16 %v293
  %v672 = vunpack.c.h.b16 %v293
  %v673 = vunpack.c.l.b16 %v294
  %v674 = vunpack.c.h.b16 %v294
  %v675 = vunpack.c.l.b16 %v295
  %v676 = vunpack.c.h.b16 %v295
  %v677 = vunpack.c.l.b16 %v296
  %v678 = vunpack.c.h.b16 %v296
  %v679 = vunpack.c.l.b16 %v297
  %v680 = vunpack.c.h.b16 %v297
  %v681 = vunpack.c.l.b16 %v298
  %v682 = vunpack.c.h.b16 %v298
  %v683 = vpack.c.b16 %v429, %v427
  %v684 = vpack.c.b16 %v430, %v428
  %v685 = vpack.c.b16 %v433, %v431
  %v686 = vpack.c.b16 %v434, %v432
  %v687 = vpack.c.b16 %v437, %v435
  %v688 = vpack.c.b16 %v438, %v436
  %v689 = vpack.c.b16 %v441, %v439
  %v690 = vpack.c.b16 %v442, %v440
  %v691 = vpack.c.b16 %v445, %v443
  %v692 = vpack.c.b16 %v446, %v444
  %v693 = vpack.c.b16 %v449, %v447
  %v694 = vpack.c.b16 %v450, %v448
  %v695 = vpack.c.b16 %v453, %v451
  %v696 = vpack.c.b16 %v454, %v452
  %v697 = vpack.c.b16 %v457, %v455
  %v698 = vpack.c.b16 %v458, %v456
  %v699 = vpack.c.b16 %v461, %v459
  %v700 = vpack.c.b16 %v462, %v460
  %v701 = vpack.c.b16 %v465, %v463
  %v702 = vpack.c.b16 %v466, %v464
  %v703 = vpack.c.b16 %v469, %v467
  %v704 = vpack.c.b16 %v470, %v468
  %v705 = vpack.c.b16 %v473, %v471
  %v706 = vpack.c.b16 %v474, %v472
  %v707 = vpack.c.b16 %v477, %v475
  %v708 = vpack.c.b16 %v478, %v476
  %v709 = vpack.c.b16 %v481, %v479
  %v710 = vpack.c.b16 %v482, %v480
  %v711 = vpack.c.b16 %v485, %v483
  %v712 = vpack.c.b16 %v486, %v484
  %v713 = vpack.c.b16 %v489, %v487
  %v714 = vpack.c.b16 %v490, %v488
  %v715 = vpack.c.b16 %v493, %v491
  %v716 = vpack.c.b16 %v494, %v492
  %v717 = vpack.c.b16 %v497, %v495
  %v718 = vpack.c.b16 %v498, %v496
  %v719 = vpack.c.b16 %v501, %v499
  %v720 = vpack.c.b16 %v502, %v500
  %v721 = vpack.c.b16 %v505, %v503
  %v722 = vpack.c.b16 %v506, %v504
  %v723 = vpack.c.b16 %v509, %v507
  %v724 = vpack.c.b16 %v510, %v508
  %v725 = vpack.c.b16 %v513, %v511
  %v726 = vpack.c.b16 %v514, %v512
  %v727 = vpack.c.b16 %v517, %v515
  %v728 = vpack.c.b16 %v518, %v516
  %v729 = vpack.c.b16 %v521, %v519
  %v730 = vpack.c.b16 %v522, %v520
  %v731 = vpack.c.b16 %v525, %v523
  %v732 = vpack.c.b16 %v526, %v524
  %v733 = vpack.c.b16 %v529, %v527
  %v734 = vpack.c.b16 %v530, %v528
  %v735 = vpack.c.b16 %v533, %v531
  %v736 = vpack.c.b16 %v534, %v532
  %v737 = vpack.c.b16 %v537, %v535
  %v738 = vpack.c.b16 %v538, %v536
  %v739 = vpack.c.b16 %v541, %v539
  %v740 = vpack.c.b16 %v542, %v540
  %v741 = vpack.c.b16 %v545, %v543
  %v742 = vpack.c.b16 %v546, %v544
  %v743 = vpack.c.b16 %v549, %v547
  %v744 = vpack.c.b16 %v550, %v548
  %v745 = vpack.c.b16 %v553, %v551
  %v746 = vpack.c.b16 %v554, %v552
  %v747 = vpack.c.b16 %v557, %v555
  %v748 = vpack.c.b16 %v558, %v556
  %v749 = vpack.c.b16 %v561, %v559
  %v750 = vpack.c.b16 %v562, %v560
  %v751 = vpack.c.b16 %v565, %v563
  %v752 = vpack.c.b16 %v566, %v564
  %v753 = vpack.c.b16 %v569, %v567
  %v754 = vpack.c.b16 %v570, %v568
  %v755 = vpack.c.b16 %v573, %v571
  %v756 = vpack.c.b16 %v574, %v572
  %v757 = vpack.c.b16 %v577, %v575
  %v758 = vpack.c.b16 %v578, %v576
  %v759 = vpack.c.b16 %v581, %v579
  %v760 = vpack.c.b16 %v582, %v580
  %v761 = vpack.c.b16 %v585, %v583
  %v762 = vpack.c.b16 %v586, %v584
  %v763 = vpack.c.b16 %v589, %v587
  %v764 = vpack.c.b16 %v590, %v588
  %v765 = vpack.c.b16 %v593, %v591
  %v766 = vpack.c.b16 %v594, %v592
  %v767 = vpack.c.b16 %v597, %v595
  %v768 = vpack.c.b16 %v598, %v596
  %v769 = vpack.c.b16 %v601, %v599
  %v770 = vpack.c.b16 %v602, %v600
  %v771 = vpack.c.b16 %v605, %v603
  %v772 = vpack.c.b16 %v606, %v604
  %v773 = vpack.c.b16 %v609, %v607
  %v774 = vpack.c.b16 %v610, %v608
  %v775 = vpack.c.b16 %v613, %v611
  %v776 = vpack.c.b16 %v614, %v612
  %v777 = vpack.c.b16 %v617, %v615
  %v778 = vpack.c.b16 %v618, %v616
  %v779 = vpack.c.b16 %v621, %v619
  %v780 = vpack.c.b16 %v622, %v620
  %v781 = vpack.c.b16 %v625, %v623
  %v782 = vpack.c.b16 %v626, %v624
  %v783 = vpack.c.b16 %v629, %v627
  %v784 = vpack.c.b16 %v630, %v628
  %v785 = vpack.c.b16 %v633, %v631
  %v786 = vpack.c.b16 %v634, %v632
  %v787 = vpack.c.b16 %v637, %v635
  %v788 = vpack.c.b16 %v638, %v636
  %v789 = vpack.c.b16 %v641, %v639
  %v790 = vpack.c.b16 %v642, %v640
  %v791 = vpack.c.b16 %v645, %v643
  %v792 = vpack.c.b16 %v646, %v644
  %v793 = vpack.c.b16 %v649, %v647
  %v794 = vpack.c.b16 %v650, %v648
  %v795 = vpack.c.b16 %v653, %v651
  %v796 = vpack.c.b16 %v654, %v652
  %v797 = vpack.c.b16 %v657, %v655
  %v798 = vpack.c.b16 %v658, %v656
  %v799 = vpack.c.b16 %v661, %v659
  %v800 = vpack.c.b16 %v662, %v660
  %v801 = vpack.c.b16 %v665, %v663
  %v802 = vpack.c.b16 %v666, %v664
  %v803 = vpack.c.b16 %v669, %v667
  %v804 = vpack.c.b16 %v670, %v668
  %v805 = vpack.c.b16 %v673, %v671
  %v806 = vpack.c.b16 %v674, %v672
  %v807 = vpack.c.b16 %v677, %v675
  %v808 = vpack.c.b16 %v678, %v676
  %v809 = vpack.c.b16 %v681, %v679
  %v810 = vpack.c.b16 %v682, %v680
  %939 = vmatpush.bf16.msra.mxu0 %v153
  %940 = vmatpush.bf16.msra.mxu0 %v151
  %941 = vmatpush.bf16.msra.mxu0 %v149
  %942 = vmatpush.bf16.msra.mxu0 %v147
  %943 = vmatpush.bf16.msra.mxu0 %v145
  %944 = vmatpush.bf16.msra.mxu0 %v143
  %945 = vmatpush.bf16.msra.mxu0 %v141
  %946 = vmatpush.bf16.msra.mxu0 %v139
  %947 = vmatmul.bf16.gmra.mxu0 %v683
  %v948 = vpop.f32.mrf.mxu0
  %v949 = vadd.f32 0.0, %v948
  %v950 = vpop.f32.mrf.mxu0
  %v951 = vadd.f32 0.0, %v950
  %952 = vmatmul.bf16.gmra.mxu0 %v685
  %v953 = vpop.f32.mrf.mxu0
  %v954 = vadd.f32 0.0, %v953
  %v955 = vpop.f32.mrf.mxu0
  %v956 = vadd.f32 0.0, %v955
  %957 = vmatmul.bf16.gmra.mxu0 %v687
  %v958 = vpop.f32.mrf.mxu0
  %v959 = vadd.f32 0.0, %v958
  %v960 = vpop.f32.mrf.mxu0
  %v961 = vadd.f32 0.0, %v960
  %962 = vmatmul.bf16.gmra.mxu0 %v689
  %v963 = vpop.f32.mrf.mxu0
  %v964 = vadd.f32 0.0, %v963
  %v965 = vpop.f32.mrf.mxu0
  %v966 = vadd.f32 0.0, %v965
  %967 = vmatmul.bf16.gmra.mxu0 %v691
  %v968 = vpop.f32.mrf.mxu0
  %v969 = vadd.f32 0.0, %v968
  %v970 = vpop.f32.mrf.mxu0
  %v971 = vadd.f32 0.0, %v970
  %972 = vmatmul.bf16.gmra.mxu0 %v693
  %v973 = vpop.f32.mrf.mxu0
  %v974 = vadd.f32 0.0, %v973
  %v975 = vpop.f32.mrf.mxu0
  %v976 = vadd.f32 0.0, %v975
  %977 = vmatmul.bf16.gmra.mxu0 %v695
  %v978 = vpop.f32.mrf.mxu0
  %v979 = vadd.f32 0.0, %v978
  %v980 = vpop.f32.mrf.mxu0
  %v981 = vadd.f32 0.0, %v980
  %982 = vmatmul.bf16.gmra.mxu0 %v697
  %v983 = vpop.f32.mrf.mxu0
  %v984 = vadd.f32 0.0, %v983
  %v985 = vpop.f32.mrf.mxu0
  %v986 = vadd.f32 0.0, %v985
  %987 = vmatmul.bf16.gmra.mxu0 %v699
  %v988 = vpop.f32.mrf.mxu0
  %v989 = vadd.f32 0.0, %v988
  %v990 = vpop.f32.mrf.mxu0
  %v991 = vadd.f32 0.0, %v990
  %992 = vmatmul.bf16.gmra.mxu0 %v701
  %v993 = vpop.f32.mrf.mxu0
  %v994 = vadd.f32 0.0, %v993
  %v995 = vpop.f32.mrf.mxu0
  %v996 = vadd.f32 0.0, %v995
  %997 = vmatmul.bf16.gmra.mxu0 %v703
  %v998 = vpop.f32.mrf.mxu0
  %v999 = vadd.f32 0.0, %v998
  %v1000 = vpop.f32.mrf.mxu0
  %v1001 = vadd.f32 0.0, %v1000
  %1002 = vmatmul.bf16.gmra.mxu0 %v705
  %v1003 = vpop.f32.mrf.mxu0
  %v1004 = vadd.f32 0.0, %v1003
  %v1005 = vpop.f32.mrf.mxu0
  %v1006 = vadd.f32 0.0, %v1005
  %1007 = vmatmul.bf16.gmra.mxu0 %v707
  %v1008 = vpop.f32.mrf.mxu0
  %v1009 = vadd.f32 0.0, %v1008
  %v1010 = vpop.f32.mrf.mxu0
  %v1011 = vadd.f32 0.0, %v1010
  %1012 = vmatmul.bf16.gmra.mxu0 %v709
  %v1013 = vpop.f32.mrf.mxu0
  %v1014 = vadd.f32 0.0, %v1013
  %v1015 = vpop.f32.mrf.mxu0
  %v1016 = vadd.f32 0.0, %v1015
  %1017 = vmatmul.bf16.gmra.mxu0 %v711
  %v1018 = vpop.f32.mrf.mxu0
  %v1019 = vadd.f32 0.0, %v1018
  %v1020 = vpop.f32.mrf.mxu0
  %v1021 = vadd.f32 0.0, %v1020
  %1022 = vmatmul.bf16.gmra.mxu0 %v713
  %v1023 = vpop.f32.mrf.mxu0
  %v1024 = vadd.f32 0.0, %v1023
  %v1025 = vpop.f32.mrf.mxu0
  %v1026 = vadd.f32 0.0, %v1025
  %1027 = vmatmul.bf16.gmra.mxu0 %v715
  %v1028 = vpop.f32.mrf.mxu0
  %v1029 = vadd.f32 0.0, %v1028
  %v1030 = vpop.f32.mrf.mxu0
  %v1031 = vadd.f32 0.0, %v1030
  %1032 = vmatmul.bf16.gmra.mxu0 %v717
  %v1033 = vpop.f32.mrf.mxu0
  %v1034 = vadd.f32 0.0, %v1033
  %v1035 = vpop.f32.mrf.mxu0
  %v1036 = vadd.f32 0.0, %v1035
  %1037 = vmatmul.bf16.gmra.mxu0 %v719
  %v1038 = vpop.f32.mrf.mxu0
  %v1039 = vadd.f32 0.0, %v1038
  %v1040 = vpop.f32.mrf.mxu0
  %v1041 = vadd.f32 0.0, %v1040
  %1042 = vmatmul.bf16.gmra.mxu0 %v721
  %v1043 = vpop.f32.mrf.mxu0
  %v1044 = vadd.f32 0.0, %v1043
  %v1045 = vpop.f32.mrf.mxu0
  %v1046 = vadd.f32 0.0, %v1045
  %1047 = vmatmul.bf16.gmra.mxu0 %v723
  %v1048 = vpop.f32.mrf.mxu0
  %v1049 = vadd.f32 0.0, %v1048
  %v1050 = vpop.f32.mrf.mxu0
  %v1051 = vadd.f32 0.0, %v1050
  %1052 = vmatmul.bf16.gmra.mxu0 %v725
  %v1053 = vpop.f32.mrf.mxu0
  %v1054 = vadd.f32 0.0, %v1053
  %v1055 = vpop.f32.mrf.mxu0
  %v1056 = vadd.f32 0.0, %v1055
  %1057 = vmatmul.bf16.gmra.mxu0 %v727
  %v1058 = vpop.f32.mrf.mxu0
  %v1059 = vadd.f32 0.0, %v1058
  %v1060 = vpop.f32.mrf.mxu0
  %v1061 = vadd.f32 0.0, %v1060
  %1062 = vmatmul.bf16.gmra.mxu0 %v729
  %v1063 = vpop.f32.mrf.mxu0
  %v1064 = vadd.f32 0.0, %v1063
  %v1065 = vpop.f32.mrf.mxu0
  %v1066 = vadd.f32 0.0, %v1065
  %1067 = vmatmul.bf16.gmra.mxu0 %v731
  %v1068 = vpop.f32.mrf.mxu0
  %v1069 = vadd.f32 0.0, %v1068
  %v1070 = vpop.f32.mrf.mxu0
  %v1071 = vadd.f32 0.0, %v1070
  %1072 = vmatmul.bf16.gmra.mxu0 %v733
  %v1073 = vpop.f32.mrf.mxu0
  %v1074 = vadd.f32 0.0, %v1073
  %v1075 = vpop.f32.mrf.mxu0
  %v1076 = vadd.f32 0.0, %v1075
  %1077 = vmatmul.bf16.gmra.mxu0 %v735
  %v1078 = vpop.f32.mrf.mxu0
  %v1079 = vadd.f32 0.0, %v1078
  %v1080 = vpop.f32.mrf.mxu0
  %v1081 = vadd.f32 0.0, %v1080
  %1082 = vmatmul.bf16.gmra.mxu0 %v737
  %v1083 = vpop.f32.mrf.mxu0
  %v1084 = vadd.f32 0.0, %v1083
  %v1085 = vpop.f32.mrf.mxu0
  %v1086 = vadd.f32 0.0, %v1085
  %1087 = vmatmul.bf16.gmra.mxu0 %v739
  %v1088 = vpop.f32.mrf.mxu0
  %v1089 = vadd.f32 0.0, %v1088
  %v1090 = vpop.f32.mrf.mxu0
  %v1091 = vadd.f32 0.0, %v1090
  %1092 = vmatmul.bf16.gmra.mxu0 %v741
  %v1093 = vpop.f32.mrf.mxu0
  %v1094 = vadd.f32 0.0, %v1093
  %v1095 = vpop.f32.mrf.mxu0
  %v1096 = vadd.f32 0.0, %v1095
  %1097 = vmatmul.bf16.gmra.mxu0 %v743
  %v1098 = vpop.f32.mrf.mxu0
  %v1099 = vadd.f32 0.0, %v1098
  %v1100 = vpop.f32.mrf.mxu0
  %v1101 = vadd.f32 0.0, %v1100
  %1102 = vmatmul.bf16.gmra.mxu0 %v745
  %v1103 = vpop.f32.mrf.mxu0
  %v1104 = vadd.f32 0.0, %v1103
  %v1105 = vpop.f32.mrf.mxu0
  %v1106 = vadd.f32 0.0, %v1105
  %1107 = vmatmul.bf16.gmra.mxu0 %v747
  %v1108 = vpop.f32.mrf.mxu0
  %v1109 = vadd.f32 0.0, %v1108
  %v1110 = vpop.f32.mrf.mxu0
  %v1111 = vadd.f32 0.0, %v1110
  %1112 = vmatmul.bf16.gmra.mxu0 %v749
  %v1113 = vpop.f32.mrf.mxu0
  %v1114 = vadd.f32 0.0, %v1113
  %v1115 = vpop.f32.mrf.mxu0
  %v1116 = vadd.f32 0.0, %v1115
  %1117 = vmatmul.bf16.gmra.mxu0 %v751
  %v1118 = vpop.f32.mrf.mxu0
  %v1119 = vadd.f32 0.0, %v1118
  %v1120 = vpop.f32.mrf.mxu0
  %v1121 = vadd.f32 0.0, %v1120
  %1122 = vmatmul.bf16.gmra.mxu0 %v753
  %v1123 = vpop.f32.mrf.mxu0
  %v1124 = vadd.f32 0.0, %v1123
  %v1125 = vpop.f32.mrf.mxu0
  %v1126 = vadd.f32 0.0, %v1125
  %1127 = vmatmul.bf16.gmra.mxu0 %v755
  %v1128 = vpop.f32.mrf.mxu0
  %v1129 = vadd.f32 0.0, %v1128
  %v1130 = vpop.f32.mrf.mxu0
  %v1131 = vadd.f32 0.0, %v1130
  %1132 = vmatmul.bf16.gmra.mxu0 %v757
  %v1133 = vpop.f32.mrf.mxu0
  %v1134 = vadd.f32 0.0, %v1133
  %v1135 = vpop.f32.mrf.mxu0
  %v1136 = vadd.f32 0.0, %v1135
  %1137 = vmatmul.bf16.gmra.mxu0 %v759
  %v1138 = vpop.f32.mrf.mxu0
  %v1139 = vadd.f32 0.0, %v1138
  %v1140 = vpop.f32.mrf.mxu0
  %v1141 = vadd.f32 0.0, %v1140
  %1142 = vmatmul.bf16.gmra.mxu0 %v761
  %v1143 = vpop.f32.mrf.mxu0
  %v1144 = vadd.f32 0.0, %v1143
  %v1145 = vpop.f32.mrf.mxu0
  %v1146 = vadd.f32 0.0, %v1145
  %1147 = vmatmul.bf16.gmra.mxu0 %v763
  %v1148 = vpop.f32.mrf.mxu0
  %v1149 = vadd.f32 0.0, %v1148
  %v1150 = vpop.f32.mrf.mxu0
  %v1151 = vadd.f32 0.0, %v1150
  %1152 = vmatmul.bf16.gmra.mxu0 %v765
  %v1153 = vpop.f32.mrf.mxu0
  %v1154 = vadd.f32 0.0, %v1153
  %v1155 = vpop.f32.mrf.mxu0
  %v1156 = vadd.f32 0.0, %v1155
  %1157 = vmatmul.bf16.gmra.mxu0 %v767
  %v1158 = vpop.f32.mrf.mxu0
  %v1159 = vadd.f32 0.0, %v1158
  %v1160 = vpop.f32.mrf.mxu0
  %v1161 = vadd.f32 0.0, %v1160
  %1162 = vmatmul.bf16.gmra.mxu0 %v769
  %v1163 = vpop.f32.mrf.mxu0
  %v1164 = vadd.f32 0.0, %v1163
  %v1165 = vpop.f32.mrf.mxu0
  %v1166 = vadd.f32 0.0, %v1165
  %1167 = vmatmul.bf16.gmra.mxu0 %v771
  %v1168 = vpop.f32.mrf.mxu0
  %v1169 = vadd.f32 0.0, %v1168
  %v1170 = vpop.f32.mrf.mxu0
  %v1171 = vadd.f32 0.0, %v1170
  %1172 = vmatmul.bf16.gmra.mxu0 %v773
  %v1173 = vpop.f32.mrf.mxu0
  %v1174 = vadd.f32 0.0, %v1173
  %v1175 = vpop.f32.mrf.mxu0
  %v1176 = vadd.f32 0.0, %v1175
  %1177 = vmatmul.bf16.gmra.mxu0 %v775
  %v1178 = vpop.f32.mrf.mxu0
  %v1179 = vadd.f32 0.0, %v1178
  %v1180 = vpop.f32.mrf.mxu0
  %v1181 = vadd.f32 0.0, %v1180
  %1182 = vmatmul.bf16.gmra.mxu0 %v777
  %v1183 = vpop.f32.mrf.mxu0
  %v1184 = vadd.f32 0.0, %v1183
  %v1185 = vpop.f32.mrf.mxu0
  %v1186 = vadd.f32 0.0, %v1185
  %1187 = vmatmul.bf16.gmra.mxu0 %v779
  %v1188 = vpop.f32.mrf.mxu0
  %v1189 = vadd.f32 0.0, %v1188
  %v1190 = vpop.f32.mrf.mxu0
  %v1191 = vadd.f32 0.0, %v1190
  %1192 = vmatmul.bf16.gmra.mxu0 %v781
  %v1193 = vpop.f32.mrf.mxu0
  %v1194 = vadd.f32 0.0, %v1193
  %v1195 = vpop.f32.mrf.mxu0
  %v1196 = vadd.f32 0.0, %v1195
  %1197 = vmatmul.bf16.gmra.mxu0 %v783
  %v1198 = vpop.f32.mrf.mxu0
  %v1199 = vadd.f32 0.0, %v1198
  %v1200 = vpop.f32.mrf.mxu0
  %v1201 = vadd.f32 0.0, %v1200
  %1202 = vmatmul.bf16.gmra.mxu0 %v785
  %v1203 = vpop.f32.mrf.mxu0
  %v1204 = vadd.f32 0.0, %v1203
  %v1205 = vpop.f32.mrf.mxu0
  %v1206 = vadd.f32 0.0, %v1205
  %1207 = vmatmul.bf16.gmra.mxu0 %v787
  %v1208 = vpop.f32.mrf.mxu0
  %v1209 = vadd.f32 0.0, %v1208
  %v1210 = vpop.f32.mrf.mxu0
  %v1211 = vadd.f32 0.0, %v1210
  %1212 = vmatmul.bf16.gmra.mxu0 %v789
  %v1213 = vpop.f32.mrf.mxu0
  %v1214 = vadd.f32 0.0, %v1213
  %v1215 = vpop.f32.mrf.mxu0
  %v1216 = vadd.f32 0.0, %v1215
  %1217 = vmatmul.bf16.gmra.mxu0 %v791
  %v1218 = vpop.f32.mrf.mxu0
  %v1219 = vadd.f32 0.0, %v1218
  %v1220 = vpop.f32.mrf.mxu0
  %v1221 = vadd.f32 0.0, %v1220
  %1222 = vmatmul.bf16.gmra.mxu0 %v793
  %v1223 = vpop.f32.mrf.mxu0
  %v1224 = vadd.f32 0.0, %v1223
  %v1225 = vpop.f32.mrf.mxu0
  %v1226 = vadd.f32 0.0, %v1225
  %1227 = vmatmul.bf16.gmra.mxu0 %v795
  %v1228 = vpop.f32.mrf.mxu0
  %v1229 = vadd.f32 0.0, %v1228
  %v1230 = vpop.f32.mrf.mxu0
  %v1231 = vadd.f32 0.0, %v1230
  %1232 = vmatmul.bf16.gmra.mxu0 %v797
  %v1233 = vpop.f32.mrf.mxu0
  %v1234 = vadd.f32 0.0, %v1233
  %v1235 = vpop.f32.mrf.mxu0
  %v1236 = vadd.f32 0.0, %v1235
  %1237 = vmatmul.bf16.gmra.mxu0 %v799
  %v1238 = vpop.f32.mrf.mxu0
  %v1239 = vadd.f32 0.0, %v1238
  %v1240 = vpop.f32.mrf.mxu0
  %v1241 = vadd.f32 0.0, %v1240
  %1242 = vmatmul.bf16.gmra.mxu0 %v801
  %v1243 = vpop.f32.mrf.mxu0
  %v1244 = vadd.f32 0.0, %v1243
  %v1245 = vpop.f32.mrf.mxu0
  %v1246 = vadd.f32 0.0, %v1245
  %1247 = vmatmul.bf16.gmra.mxu0 %v803
  %v1248 = vpop.f32.mrf.mxu0
  %v1249 = vadd.f32 0.0, %v1248
  %v1250 = vpop.f32.mrf.mxu0
  %v1251 = vadd.f32 0.0, %v1250
  %1252 = vmatmul.bf16.gmra.mxu0 %v805
  %v1253 = vpop.f32.mrf.mxu0
  %v1254 = vadd.f32 0.0, %v1253
  %v1255 = vpop.f32.mrf.mxu0
  %v1256 = vadd.f32 0.0, %v1255
  %1257 = vmatmul.bf16.gmra.mxu0 %v807
  %v1258 = vpop.f32.mrf.mxu0
  %v1259 = vadd.f32 0.0, %v1258
  %v1260 = vpop.f32.mrf.mxu0
  %v1261 = vadd.f32 0.0, %v1260
  %1262 = vmatmul.bf16.gmra.mxu0 %v809
  %v1263 = vpop.f32.mrf.mxu0
  %v1264 = vadd.f32 0.0, %v1263
  %v1265 = vpop.f32.mrf.mxu0
  %v1266 = vadd.f32 0.0, %v1265
  %1267 = vdwg.mxu0
  %1268 = vmatpush.bf16.msra.mxu0 %v169
  %1269 = vmatpush.bf16.msra.mxu0 %v167
  %1270 = vmatpush.bf16.msra.mxu0 %v165
  %1271 = vmatpush.bf16.msra.mxu0 %v163
  %1272 = vmatpush.bf16.msra.mxu0 %v161
  %1273 = vmatpush.bf16.msra.mxu0 %v159
  %1274 = vmatpush.bf16.msra.mxu0 %v157
  %1275 = vmatpush.bf16.msra.mxu0 %v155
  %1276 = vmatmul.bf16.gmra.mxu0 %v684
  %v1277 = vpop.f32.mrf.mxu0
  %v1278 = vadd.f32 %v949, %v1277
  %v1279 = vpop.f32.mrf.mxu0
  %v1280 = vadd.f32 %v951, %v1279
  %1281 = vmatmul.bf16.gmra.mxu0 %v686
  %v1282 = vpop.f32.mrf.mxu0
  %v1283 = vadd.f32 %v954, %v1282
  %v1284 = vpop.f32.mrf.mxu0
  %v1285 = vadd.f32 %v956, %v1284
  %1286 = vmatmul.bf16.gmra.mxu0 %v688
  %v1287 = vpop.f32.mrf.mxu0
  %v1288 = vadd.f32 %v959, %v1287
  %v1289 = vpop.f32.mrf.mxu0
  %v1290 = vadd.f32 %v961, %v1289
  %1291 = vmatmul.bf16.gmra.mxu0 %v690
  %v1292 = vpop.f32.mrf.mxu0
  %v1293 = vadd.f32 %v964, %v1292
  %v1294 = vpop.f32.mrf.mxu0
  %v1295 = vadd.f32 %v966, %v1294
  %1296 = vmatmul.bf16.gmra.mxu0 %v692
  %v1297 = vpop.f32.mrf.mxu0
  %v1298 = vadd.f32 %v969, %v1297
  %v1299 = vpop.f32.mrf.mxu0
  %v1300 = vadd.f32 %v971, %v1299
  %1301 = vmatmul.bf16.gmra.mxu0 %v694
  %v1302 = vpop.f32.mrf.mxu0
  %v1303 = vadd.f32 %v974, %v1302
  %v1304 = vpop.f32.mrf.mxu0
  %v1305 = vadd.f32 %v976, %v1304
  %1306 = vmatmul.bf16.gmra.mxu0 %v696
  %v1307 = vpop.f32.mrf.mxu0
  %v1308 = vadd.f32 %v979, %v1307
  %v1309 = vpop.f32.mrf.mxu0
  %v1310 = vadd.f32 %v981, %v1309
  %1311 = vmatmul.bf16.gmra.mxu0 %v698
  %v1312 = vpop.f32.mrf.mxu0
  %v1313 = vadd.f32 %v984, %v1312
  %v1314 = vpop.f32.mrf.mxu0
  %v1315 = vadd.f32 %v986, %v1314
  %1316 = vmatmul.bf16.gmra.mxu0 %v700
  %v1317 = vpop.f32.mrf.mxu0
  %v1318 = vadd.f32 %v989, %v1317
  %v1319 = vpop.f32.mrf.mxu0
  %v1320 = vadd.f32 %v991, %v1319
  %1321 = vmatmul.bf16.gmra.mxu0 %v702
  %v1322 = vpop.f32.mrf.mxu0
  %v1323 = vadd.f32 %v994, %v1322
  %v1324 = vpop.f32.mrf.mxu0
  %v1325 = vadd.f32 %v996, %v1324
  %1326 = vmatmul.bf16.gmra.mxu0 %v704
  %v1327 = vpop.f32.mrf.mxu0
  %v1328 = vadd.f32 %v999, %v1327
  %v1329 = vpop.f32.mrf.mxu0
  %v1330 = vadd.f32 %v1001, %v1329
  %1331 = vmatmul.bf16.gmra.mxu0 %v706
  %v1332 = vpop.f32.mrf.mxu0
  %v1333 = vadd.f32 %v1004, %v1332
  %v1334 = vpop.f32.mrf.mxu0
  %v1335 = vadd.f32 %v1006, %v1334
  %1336 = vmatmul.bf16.gmra.mxu0 %v708
  %v1337 = vpop.f32.mrf.mxu0
  %v1338 = vadd.f32 %v1009, %v1337
  %v1339 = vpop.f32.mrf.mxu0
  %v1340 = vadd.f32 %v1011, %v1339
  %1341 = vmatmul.bf16.gmra.mxu0 %v710
  %v1342 = vpop.f32.mrf.mxu0
  %v1343 = vadd.f32 %v1014, %v1342
  %v1344 = vpop.f32.mrf.mxu0
  %v1345 = vadd.f32 %v1016, %v1344
  %1346 = vmatmul.bf16.gmra.mxu0 %v712
  %v1347 = vpop.f32.mrf.mxu0
  %v1348 = vadd.f32 %v1019, %v1347
  %v1349 = vpop.f32.mrf.mxu0
  %v1350 = vadd.f32 %v1021, %v1349
  %1351 = vmatmul.bf16.gmra.mxu0 %v714
  %v1352 = vpop.f32.mrf.mxu0
  %v1353 = vadd.f32 %v1024, %v1352
  %v1354 = vpop.f32.mrf.mxu0
  %v1355 = vadd.f32 %v1026, %v1354
  %1356 = vmatmul.bf16.gmra.mxu0 %v716
  %v1357 = vpop.f32.mrf.mxu0
  %v1358 = vadd.f32 %v1029, %v1357
  %v1359 = vpop.f32.mrf.mxu0
  %v1360 = vadd.f32 %v1031, %v1359
  %1361 = vmatmul.bf16.gmra.mxu0 %v718
  %v1362 = vpop.f32.mrf.mxu0
  %v1363 = vadd.f32 %v1034, %v1362
  %v1364 = vpop.f32.mrf.mxu0
  %v1365 = vadd.f32 %v1036, %v1364
  %1366 = vmatmul.bf16.gmra.mxu0 %v720
  %v1367 = vpop.f32.mrf.mxu0
  %v1368 = vadd.f32 %v1039, %v1367
  %v1369 = vpop.f32.mrf.mxu0
  %v1370 = vadd.f32 %v1041, %v1369
  %1371 = vmatmul.bf16.gmra.mxu0 %v722
  %v1372 = vpop.f32.mrf.mxu0
  %v1373 = vadd.f32 %v1044, %v1372
  %v1374 = vpop.f32.mrf.mxu0
  %v1375 = vadd.f32 %v1046, %v1374
  %1376 = vmatmul.bf16.gmra.mxu0 %v724
  %v1377 = vpop.f32.mrf.mxu0
  %v1378 = vadd.f32 %v1049, %v1377
  %v1379 = vpop.f32.mrf.mxu0
  %v1380 = vadd.f32 %v1051, %v1379
  %1381 = vmatmul.bf16.gmra.mxu0 %v726
  %v1382 = vpop.f32.mrf.mxu0
  %v1383 = vadd.f32 %v1054, %v1382
  %v1384 = vpop.f32.mrf.mxu0
  %v1385 = vadd.f32 %v1056, %v1384
  %1386 = vmatmul.bf16.gmra.mxu0 %v728
  %v1387 = vpop.f32.mrf.mxu0
  %v1388 = vadd.f32 %v1059, %v1387
  %v1389 = vpop.f32.mrf.mxu0
  %v1390 = vadd.f32 %v1061, %v1389
  %1391 = vmatmul.bf16.gmra.mxu0 %v730
  %v1392 = vpop.f32.mrf.mxu0
  %v1393 = vadd.f32 %v1064, %v1392
  %v1394 = vpop.f32.mrf.mxu0
  %v1395 = vadd.f32 %v1066, %v1394
  %1396 = vmatmul.bf16.gmra.mxu0 %v732
  %v1397 = vpop.f32.mrf.mxu0
  %v1398 = vadd.f32 %v1069, %v1397
  %v1399 = vpop.f32.mrf.mxu0
  %v1400 = vadd.f32 %v1071, %v1399
  %1401 = vmatmul.bf16.gmra.mxu0 %v734
  %v1402 = vpop.f32.mrf.mxu0
  %v1403 = vadd.f32 %v1074, %v1402
  %v1404 = vpop.f32.mrf.mxu0
  %v1405 = vadd.f32 %v1076, %v1404
  %1406 = vmatmul.bf16.gmra.mxu0 %v736
  %v1407 = vpop.f32.mrf.mxu0
  %v1408 = vadd.f32 %v1079, %v1407
  %v1409 = vpop.f32.mrf.mxu0
  %v1410 = vadd.f32 %v1081, %v1409
  %1411 = vmatmul.bf16.gmra.mxu0 %v738
  %v1412 = vpop.f32.mrf.mxu0
  %v1413 = vadd.f32 %v1084, %v1412
  %v1414 = vpop.f32.mrf.mxu0
  %v1415 = vadd.f32 %v1086, %v1414
  %1416 = vmatmul.bf16.gmra.mxu0 %v740
  %v1417 = vpop.f32.mrf.mxu0
  %v1418 = vadd.f32 %v1089, %v1417
  %v1419 = vpop.f32.mrf.mxu0
  %v1420 = vadd.f32 %v1091, %v1419
  %1421 = vmatmul.bf16.gmra.mxu0 %v742
  %v1422 = vpop.f32.mrf.mxu0
  %v1423 = vadd.f32 %v1094, %v1422
  %v1424 = vpop.f32.mrf.mxu0
  %v1425 = vadd.f32 %v1096, %v1424
  %1426 = vmatmul.bf16.gmra.mxu0 %v744
  %v1427 = vpop.f32.mrf.mxu0
  %v1428 = vadd.f32 %v1099, %v1427
  %v1429 = vpop.f32.mrf.mxu0
  %v1430 = vadd.f32 %v1101, %v1429
  %1431 = vmatmul.bf16.gmra.mxu0 %v746
  %v1432 = vpop.f32.mrf.mxu0
  %v1433 = vadd.f32 %v1104, %v1432
  %v1434 = vpop.f32.mrf.mxu0
  %v1435 = vadd.f32 %v1106, %v1434
  %1436 = vmatmul.bf16.gmra.mxu0 %v748
  %v1437 = vpop.f32.mrf.mxu0
  %v1438 = vadd.f32 %v1109, %v1437
  %v1439 = vpop.f32.mrf.mxu0
  %v1440 = vadd.f32 %v1111, %v1439
  %1441 = vmatmul.bf16.gmra.mxu0 %v750
  %v1442 = vpop.f32.mrf.mxu0
  %v1443 = vadd.f32 %v1114, %v1442
  %v1444 = vpop.f32.mrf.mxu0
  %v1445 = vadd.f32 %v1116, %v1444
  %1446 = vmatmul.bf16.gmra.mxu0 %v752
  %v1447 = vpop.f32.mrf.mxu0
  %v1448 = vadd.f32 %v1119, %v1447
  %v1449 = vpop.f32.mrf.mxu0
  %v1450 = vadd.f32 %v1121, %v1449
  %1451 = vmatmul.bf16.gmra.mxu0 %v754
  %v1452 = vpop.f32.mrf.mxu0
  %v1453 = vadd.f32 %v1124, %v1452
  %v1454 = vpop.f32.mrf.mxu0
  %v1455 = vadd.f32 %v1126, %v1454
  %1456 = vmatmul.bf16.gmra.mxu0 %v756
  %v1457 = vpop.f32.mrf.mxu0
  %v1458 = vadd.f32 %v1129, %v1457
  %v1459 = vpop.f32.mrf.mxu0
  %v1460 = vadd.f32 %v1131, %v1459
  %1461 = vmatmul.bf16.gmra.mxu0 %v758
  %v1462 = vpop.f32.mrf.mxu0
  %v1463 = vadd.f32 %v1134, %v1462
  %v1464 = vpop.f32.mrf.mxu0
  %v1465 = vadd.f32 %v1136, %v1464
  %1466 = vmatmul.bf16.gmra.mxu0 %v760
  %v1467 = vpop.f32.mrf.mxu0
  %v1468 = vadd.f32 %v1139, %v1467
  %v1469 = vpop.f32.mrf.mxu0
  %v1470 = vadd.f32 %v1141, %v1469
  %1471 = vmatmul.bf16.gmra.mxu0 %v762
  %v1472 = vpop.f32.mrf.mxu0
  %v1473 = vadd.f32 %v1144, %v1472
  %v1474 = vpop.f32.mrf.mxu0
  %v1475 = vadd.f32 %v1146, %v1474
  %1476 = vmatmul.bf16.gmra.mxu0 %v764
  %v1477 = vpop.f32.mrf.mxu0
  %v1478 = vadd.f32 %v1149, %v1477
  %v1479 = vpop.f32.mrf.mxu0
  %v1480 = vadd.f32 %v1151, %v1479
  %1481 = vmatmul.bf16.gmra.mxu0 %v766
  %v1482 = vpop.f32.mrf.mxu0
  %v1483 = vadd.f32 %v1154, %v1482
  %v1484 = vpop.f32.mrf.mxu0
  %v1485 = vadd.f32 %v1156, %v1484
  %1486 = vmatmul.bf16.gmra.mxu0 %v768
  %v1487 = vpop.f32.mrf.mxu0
  %v1488 = vadd.f32 %v1159, %v1487
  %v1489 = vpop.f32.mrf.mxu0
  %v1490 = vadd.f32 %v1161, %v1489
  %1491 = vmatmul.bf16.gmra.mxu0 %v770
  %v1492 = vpop.f32.mrf.mxu0
  %v1493 = vadd.f32 %v1164, %v1492
  %v1494 = vpop.f32.mrf.mxu0
  %v1495 = vadd.f32 %v1166, %v1494
  %1496 = vmatmul.bf16.gmra.mxu0 %v772
  %v1497 = vpop.f32.mrf.mxu0
  %v1498 = vadd.f32 %v1169, %v1497
  %v1499 = vpop.f32.mrf.mxu0
  %v1500 = vadd.f32 %v1171, %v1499
  %1501 = vmatmul.bf16.gmra.mxu0 %v774
  %v1502 = vpop.f32.mrf.mxu0
  %v1503 = vadd.f32 %v1174, %v1502
  %v1504 = vpop.f32.mrf.mxu0
  %v1505 = vadd.f32 %v1176, %v1504
  %1506 = vmatmul.bf16.gmra.mxu0 %v776
  %v1507 = vpop.f32.mrf.mxu0
  %v1508 = vadd.f32 %v1179, %v1507
  %v1509 = vpop.f32.mrf.mxu0
  %v1510 = vadd.f32 %v1181, %v1509
  %1511 = vmatmul.bf16.gmra.mxu0 %v778
  %v1512 = vpop.f32.mrf.mxu0
  %v1513 = vadd.f32 %v1184, %v1512
  %v1514 = vpop.f32.mrf.mxu0
  %v1515 = vadd.f32 %v1186, %v1514
  %1516 = vmatmul.bf16.gmra.mxu0 %v780
  %v1517 = vpop.f32.mrf.mxu0
  %v1518 = vadd.f32 %v1189, %v1517
  %v1519 = vpop.f32.mrf.mxu0
  %v1520 = vadd.f32 %v1191, %v1519
  %1521 = vmatmul.bf16.gmra.mxu0 %v782
  %v1522 = vpop.f32.mrf.mxu0
  %v1523 = vadd.f32 %v1194, %v1522
  %v1524 = vpop.f32.mrf.mxu0
  %v1525 = vadd.f32 %v1196, %v1524
  %1526 = vmatmul.bf16.gmra.mxu0 %v784
  %v1527 = vpop.f32.mrf.mxu0
  %v1528 = vadd.f32 %v1199, %v1527
  %v1529 = vpop.f32.mrf.mxu0
  %v1530 = vadd.f32 %v1201, %v1529
  %1531 = vmatmul.bf16.gmra.mxu0 %v786
  %v1532 = vpop.f32.mrf.mxu0
  %v1533 = vadd.f32 %v1204, %v1532
  %v1534 = vpop.f32.mrf.mxu0
  %v1535 = vadd.f32 %v1206, %v1534
  %1536 = vmatmul.bf16.gmra.mxu0 %v788
  %v1537 = vpop.f32.mrf.mxu0
  %v1538 = vadd.f32 %v1209, %v1537
  %v1539 = vpop.f32.mrf.mxu0
  %v1540 = vadd.f32 %v1211, %v1539
  %1541 = vmatmul.bf16.gmra.mxu0 %v790
  %v1542 = vpop.f32.mrf.mxu0
  %v1543 = vadd.f32 %v1214, %v1542
  %v1544 = vpop.f32.mrf.mxu0
  %v1545 = vadd.f32 %v1216, %v1544
  %1546 = vmatmul.bf16.gmra.mxu0 %v792
  %v1547 = vpop.f32.mrf.mxu0
  %v1548 = vadd.f32 %v1219, %v1547
  %v1549 = vpop.f32.mrf.mxu0
  %v1550 = vadd.f32 %v1221, %v1549
  %1551 = vmatmul.bf16.gmra.mxu0 %v794
  %v1552 = vpop.f32.mrf.mxu0
  %v1553 = vadd.f32 %v1224, %v1552
  %v1554 = vpop.f32.mrf.mxu0
  %v1555 = vadd.f32 %v1226, %v1554
  %1556 = vmatmul.bf16.gmra.mxu0 %v796
  %v1557 = vpop.f32.mrf.mxu0
  %v1558 = vadd.f32 %v1229, %v1557
  %v1559 = vpop.f32.mrf.mxu0
  %v1560 = vadd.f32 %v1231, %v1559
  %1561 = vmatmul.bf16.gmra.mxu0 %v798
  %v1562 = vpop.f32.mrf.mxu0
  %v1563 = vadd.f32 %v1234, %v1562
  %v1564 = vpop.f32.mrf.mxu0
  %v1565 = vadd.f32 %v1236, %v1564
  %1566 = vmatmul.bf16.gmra.mxu0 %v800
  %v1567 = vpop.f32.mrf.mxu0
  %v1568 = vadd.f32 %v1239, %v1567
  %v1569 = vpop.f32.mrf.mxu0
  %v1570 = vadd.f32 %v1241, %v1569
  %1571 = vmatmul.bf16.gmra.mxu0 %v802
  %v1572 = vpop.f32.mrf.mxu0
  %v1573 = vadd.f32 %v1244, %v1572
  %v1574 = vpop.f32.mrf.mxu0
  %v1575 = vadd.f32 %v1246, %v1574
  %1576 = vmatmul.bf16.gmra.mxu0 %v804
  %v1577 = vpop.f32.mrf.mxu0
  %v1578 = vadd.f32 %v1249, %v1577
  %v1579 = vpop.f32.mrf.mxu0
  %v1580 = vadd.f32 %v1251, %v1579
  %1581 = vmatmul.bf16.gmra.mxu0 %v806
  %v1582 = vpop.f32.mrf.mxu0
  %v1583 = vadd.f32 %v1254, %v1582
  %v1584 = vpop.f32.mrf.mxu0
  %v1585 = vadd.f32 %v1256, %v1584
  %1586 = vmatmul.bf16.gmra.mxu0 %v808
  %v1587 = vpop.f32.mrf.mxu0
  %v1588 = vadd.f32 %v1259, %v1587
  %v1589 = vpop.f32.mrf.mxu0
  %v1590 = vadd.f32 %v1261, %v1589
  %1591 = vmatmul.bf16.gmra.mxu0 %v810
  %v1592 = vpop.f32.mrf.mxu0
  %v1593 = vadd.f32 %v1264, %v1592
  %v1594 = vpop.f32.mrf.mxu0
  %v1595 = vadd.f32 %v1266, %v1594
  %1596 = vdwg.mxu0
  %1597 = vmatpush.bf16.msra.mxu0 %v154
  %1598 = vmatpush.bf16.msra.mxu0 %v152
  %1599 = vmatpush.bf16.msra.mxu0 %v150
  %1600 = vmatpush.bf16.msra.mxu0 %v148
  %1601 = vmatpush.bf16.msra.mxu0 %v146
  %1602 = vmatpush.bf16.msra.mxu0 %v144
  %1603 = vmatpush.bf16.msra.mxu0 %v142
  %1604 = vmatpush.bf16.msra.mxu0 %v140
  %1605 = vmatmul.bf16.gmra.mxu0 %v683
  %v1606 = vpop.f32.mrf.mxu0
  %v1607 = vadd.f32 0.0, %v1606
  %v1608 = vpop.f32.mrf.mxu0
  %v1609 = vadd.f32 0.0, %v1608
  %1610 = vmatmul.bf16.gmra.mxu0 %v685
  %v1611 = vpop.f32.mrf.mxu0
  %v1612 = vadd.f32 0.0, %v1611
  %v1613 = vpop.f32.mrf.mxu0
  %v1614 = vadd.f32 0.0, %v1613
  %1615 = vmatmul.bf16.gmra.mxu0 %v687
  %v1616 = vpop.f32.mrf.mxu0
  %v1617 = vadd.f32 0.0, %v1616
  %v1618 = vpop.f32.mrf.mxu0
  %v1619 = vadd.f32 0.0, %v1618
  %1620 = vmatmul.bf16.gmra.mxu0 %v689
  %v1621 = vpop.f32.mrf.mxu0
  %v1622 = vadd.f32 0.0, %v1621
  %v1623 = vpop.f32.mrf.mxu0
  %v1624 = vadd.f32 0.0, %v1623
  %1625 = vmatmul.bf16.gmra.mxu0 %v691
  %v1626 = vpop.f32.mrf.mxu0
  %v1627 = vadd.f32 0.0, %v1626
  %v1628 = vpop.f32.mrf.mxu0
  %v1629 = vadd.f32 0.0, %v1628
  %1630 = vmatmul.bf16.gmra.mxu0 %v693
  %v1631 = vpop.f32.mrf.mxu0
  %v1632 = vadd.f32 0.0, %v1631
  %v1633 = vpop.f32.mrf.mxu0
  %v1634 = vadd.f32 0.0, %v1633
  %1635 = vmatmul.bf16.gmra.mxu0 %v695
  %v1636 = vpop.f32.mrf.mxu0
  %v1637 = vadd.f32 0.0, %v1636
  %v1638 = vpop.f32.mrf.mxu0
  %v1639 = vadd.f32 0.0, %v1638
  %1640 = vmatmul.bf16.gmra.mxu0 %v697
  %v1641 = vpop.f32.mrf.mxu0
  %v1642 = vadd.f32 0.0, %v1641
  %v1643 = vpop.f32.mrf.mxu0
  %v1644 = vadd.f32 0.0, %v1643
  %1645 = vmatmul.bf16.gmra.mxu0 %v699
  %v1646 = vpop.f32.mrf.mxu0
  %v1647 = vadd.f32 0.0, %v1646
  %v1648 = vpop.f32.mrf.mxu0
  %v1649 = vadd.f32 0.0, %v1648
  %1650 = vmatmul.bf16.gmra.mxu0 %v701
  %v1651 = vpop.f32.mrf.mxu0
  %v1652 = vadd.f32 0.0, %v1651
  %v1653 = vpop.f32.mrf.mxu0
  %v1654 = vadd.f32 0.0, %v1653
  %1655 = vmatmul.bf16.gmra.mxu0 %v703
  %v1656 = vpop.f32.mrf.mxu0
  %v1657 = vadd.f32 0.0, %v1656
  %v1658 = vpop.f32.mrf.mxu0
  %v1659 = vadd.f32 0.0, %v1658
  %1660 = vmatmul.bf16.gmra.mxu0 %v705
  %v1661 = vpop.f32.mrf.mxu0
  %v1662 = vadd.f32 0.0, %v1661
  %v1663 = vpop.f32.mrf.mxu0
  %v1664 = vadd.f32 0.0, %v1663
  %1665 = vmatmul.bf16.gmra.mxu0 %v707
  %v1666 = vpop.f32.mrf.mxu0
  %v1667 = vadd.f32 0.0, %v1666
  %v1668 = vpop.f32.mrf.mxu0
  %v1669 = vadd.f32 0.0, %v1668
  %1670 = vmatmul.bf16.gmra.mxu0 %v709
  %v1671 = vpop.f32.mrf.mxu0
  %v1672 = vadd.f32 0.0, %v1671
  %v1673 = vpop.f32.mrf.mxu0
  %v1674 = vadd.f32 0.0, %v1673
  %1675 = vmatmul.bf16.gmra.mxu0 %v711
  %v1676 = vpop.f32.mrf.mxu0
  %v1677 = vadd.f32 0.0, %v1676
  %v1678 = vpop.f32.mrf.mxu0
  %v1679 = vadd.f32 0.0, %v1678
  %1680 = vmatmul.bf16.gmra.mxu0 %v713
  %v1681 = vpop.f32.mrf.mxu0
  %v1682 = vadd.f32 0.0, %v1681
  %v1683 = vpop.f32.mrf.mxu0
  %v1684 = vadd.f32 0.0, %v1683
  %1685 = vmatmul.bf16.gmra.mxu0 %v715
  %v1686 = vpop.f32.mrf.mxu0
  %v1687 = vadd.f32 0.0, %v1686
  %v1688 = vpop.f32.mrf.mxu0
  %v1689 = vadd.f32 0.0, %v1688
  %1690 = vmatmul.bf16.gmra.mxu0 %v717
  %v1691 = vpop.f32.mrf.mxu0
  %v1692 = vadd.f32 0.0, %v1691
  %v1693 = vpop.f32.mrf.mxu0
  %v1694 = vadd.f32 0.0, %v1693
  %1695 = vmatmul.bf16.gmra.mxu0 %v719
  %v1696 = vpop.f32.mrf.mxu0
  %v1697 = vadd.f32 0.0, %v1696
  %v1698 = vpop.f32.mrf.mxu0
  %v1699 = vadd.f32 0.0, %v1698
  %1700 = vmatmul.bf16.gmra.mxu0 %v721
  %v1701 = vpop.f32.mrf.mxu0
  %v1702 = vadd.f32 0.0, %v1701
  %v1703 = vpop.f32.mrf.mxu0
  %v1704 = vadd.f32 0.0, %v1703
  %1705 = vmatmul.bf16.gmra.mxu0 %v723
  %v1706 = vpop.f32.mrf.mxu0
  %v1707 = vadd.f32 0.0, %v1706
  %v1708 = vpop.f32.mrf.mxu0
  %v1709 = vadd.f32 0.0, %v1708
  %1710 = vmatmul.bf16.gmra.mxu0 %v725
  %v1711 = vpop.f32.mrf.mxu0
  %v1712 = vadd.f32 0.0, %v1711
  %v1713 = vpop.f32.mrf.mxu0
  %v1714 = vadd.f32 0.0, %v1713
  %1715 = vmatmul.bf16.gmra.mxu0 %v727
  %v1716 = vpop.f32.mrf.mxu0
  %v1717 = vadd.f32 0.0, %v1716
  %v1718 = vpop.f32.mrf.mxu0
  %v1719 = vadd.f32 0.0, %v1718
  %1720 = vmatmul.bf16.gmra.mxu0 %v729
  %v1721 = vpop.f32.mrf.mxu0
  %v1722 = vadd.f32 0.0, %v1721
  %v1723 = vpop.f32.mrf.mxu0
  %v1724 = vadd.f32 0.0, %v1723
  %1725 = vmatmul.bf16.gmra.mxu0 %v731
  %v1726 = vpop.f32.mrf.mxu0
  %v1727 = vadd.f32 0.0, %v1726
  %v1728 = vpop.f32.mrf.mxu0
  %v1729 = vadd.f32 0.0, %v1728
  %1730 = vmatmul.bf16.gmra.mxu0 %v733
  %v1731 = vpop.f32.mrf.mxu0
  %v1732 = vadd.f32 0.0, %v1731
  %v1733 = vpop.f32.mrf.mxu0
  %v1734 = vadd.f32 0.0, %v1733
  %1735 = vmatmul.bf16.gmra.mxu0 %v735
  %v1736 = vpop.f32.mrf.mxu0
  %v1737 = vadd.f32 0.0, %v1736
  %v1738 = vpop.f32.mrf.mxu0
  %v1739 = vadd.f32 0.0, %v1738
  %1740 = vmatmul.bf16.gmra.mxu0 %v737
  %v1741 = vpop.f32.mrf.mxu0
  %v1742 = vadd.f32 0.0, %v1741
  %v1743 = vpop.f32.mrf.mxu0
  %v1744 = vadd.f32 0.0, %v1743
  %1745 = vmatmul.bf16.gmra.mxu0 %v739
  %v1746 = vpop.f32.mrf.mxu0
  %v1747 = vadd.f32 0.0, %v1746
  %v1748 = vpop.f32.mrf.mxu0
  %v1749 = vadd.f32 0.0, %v1748
  %1750 = vmatmul.bf16.gmra.mxu0 %v741
  %v1751 = vpop.f32.mrf.mxu0
  %v1752 = vadd.f32 0.0, %v1751
  %v1753 = vpop.f32.mrf.mxu0
  %v1754 = vadd.f32 0.0, %v1753
  %1755 = vmatmul.bf16.gmra.mxu0 %v743
  %v1756 = vpop.f32.mrf.mxu0
  %v1757 = vadd.f32 0.0, %v1756
  %v1758 = vpop.f32.mrf.mxu0
  %v1759 = vadd.f32 0.0, %v1758
  %1760 = vmatmul.bf16.gmra.mxu0 %v745
  %v1761 = vpop.f32.mrf.mxu0
  %v1762 = vadd.f32 0.0, %v1761
  %v1763 = vpop.f32.mrf.mxu0
  %v1764 = vadd.f32 0.0, %v1763
  %1765 = vmatmul.bf16.gmra.mxu0 %v747
  %v1766 = vpop.f32.mrf.mxu0
  %v1767 = vadd.f32 0.0, %v1766
  %v1768 = vpop.f32.mrf.mxu0
  %v1769 = vadd.f32 0.0, %v1768
  %1770 = vmatmul.bf16.gmra.mxu0 %v749
  %v1771 = vpop.f32.mrf.mxu0
  %v1772 = vadd.f32 0.0, %v1771
  %v1773 = vpop.f32.mrf.mxu0
  %v1774 = vadd.f32 0.0, %v1773
  %1775 = vmatmul.bf16.gmra.mxu0 %v751
  %v1776 = vpop.f32.mrf.mxu0
  %v1777 = vadd.f32 0.0, %v1776
  %v1778 = vpop.f32.mrf.mxu0
  %v1779 = vadd.f32 0.0, %v1778
  %1780 = vmatmul.bf16.gmra.mxu0 %v753
  %v1781 = vpop.f32.mrf.mxu0
  %v1782 = vadd.f32 0.0, %v1781
  %v1783 = vpop.f32.mrf.mxu0
  %v1784 = vadd.f32 0.0, %v1783
  %1785 = vmatmul.bf16.gmra.mxu0 %v755
  %v1786 = vpop.f32.mrf.mxu0
  %v1787 = vadd.f32 0.0, %v1786
  %v1788 = vpop.f32.mrf.mxu0
  %v1789 = vadd.f32 0.0, %v1788
  %1790 = vmatmul.bf16.gmra.mxu0 %v757
  %v1791 = vpop.f32.mrf.mxu0
  %v1792 = vadd.f32 0.0, %v1791
  %v1793 = vpop.f32.mrf.mxu0
  %v1794 = vadd.f32 0.0, %v1793
  %1795 = vmatmul.bf16.gmra.mxu0 %v759
  %v1796 = vpop.f32.mrf.mxu0
  %v1797 = vadd.f32 0.0, %v1796
  %v1798 = vpop.f32.mrf.mxu0
  %v1799 = vadd.f32 0.0, %v1798
  %1800 = vmatmul.bf16.gmra.mxu0 %v761
  %v1801 = vpop.f32.mrf.mxu0
  %v1802 = vadd.f32 0.0, %v1801
  %v1803 = vpop.f32.mrf.mxu0
  %v1804 = vadd.f32 0.0, %v1803
  %1805 = vmatmul.bf16.gmra.mxu0 %v763
  %v1806 = vpop.f32.mrf.mxu0
  %v1807 = vadd.f32 0.0, %v1806
  %v1808 = vpop.f32.mrf.mxu0
  %v1809 = vadd.f32 0.0, %v1808
  %1810 = vmatmul.bf16.gmra.mxu0 %v765
  %v1811 = vpop.f32.mrf.mxu0
  %v1812 = vadd.f32 0.0, %v1811
  %v1813 = vpop.f32.mrf.mxu0
  %v1814 = vadd.f32 0.0, %v1813
  %1815 = vmatmul.bf16.gmra.mxu0 %v767
  %v1816 = vpop.f32.mrf.mxu0
  %v1817 = vadd.f32 0.0, %v1816
  %v1818 = vpop.f32.mrf.mxu0
  %v1819 = vadd.f32 0.0, %v1818
  %1820 = vmatmul.bf16.gmra.mxu0 %v769
  %v1821 = vpop.f32.mrf.mxu0
  %v1822 = vadd.f32 0.0, %v1821
  %v1823 = vpop.f32.mrf.mxu0
  %v1824 = vadd.f32 0.0, %v1823
  %1825 = vmatmul.bf16.gmra.mxu0 %v771
  %v1826 = vpop.f32.mrf.mxu0
  %v1827 = vadd.f32 0.0, %v1826
  %v1828 = vpop.f32.mrf.mxu0
  %v1829 = vadd.f32 0.0, %v1828
  %1830 = vmatmul.bf16.gmra.mxu0 %v773
  %v1831 = vpop.f32.mrf.mxu0
  %v1832 = vadd.f32 0.0, %v1831
  %v1833 = vpop.f32.mrf.mxu0
  %v1834 = vadd.f32 0.0, %v1833
  %1835 = vmatmul.bf16.gmra.mxu0 %v775
  %v1836 = vpop.f32.mrf.mxu0
  %v1837 = vadd.f32 0.0, %v1836
  %v1838 = vpop.f32.mrf.mxu0
  %v1839 = vadd.f32 0.0, %v1838
  %1840 = vmatmul.bf16.gmra.mxu0 %v777
  %v1841 = vpop.f32.mrf.mxu0
  %v1842 = vadd.f32 0.0, %v1841
  %v1843 = vpop.f32.mrf.mxu0
  %v1844 = vadd.f32 0.0, %v1843
  %1845 = vmatmul.bf16.gmra.mxu0 %v779
  %v1846 = vpop.f32.mrf.mxu0
  %v1847 = vadd.f32 0.0, %v1846
  %v1848 = vpop.f32.mrf.mxu0
  %v1849 = vadd.f32 0.0, %v1848
  %1850 = vmatmul.bf16.gmra.mxu0 %v781
  %v1851 = vpop.f32.mrf.mxu0
  %v1852 = vadd.f32 0.0, %v1851
  %v1853 = vpop.f32.mrf.mxu0
  %v1854 = vadd.f32 0.0, %v1853
  %1855 = vmatmul.bf16.gmra.mxu0 %v783
  %v1856 = vpop.f32.mrf.mxu0
  %v1857 = vadd.f32 0.0, %v1856
  %v1858 = vpop.f32.mrf.mxu0
  %v1859 = vadd.f32 0.0, %v1858
  %1860 = vmatmul.bf16.gmra.mxu0 %v785
  %v1861 = vpop.f32.mrf.mxu0
  %v1862 = vadd.f32 0.0, %v1861
  %v1863 = vpop.f32.mrf.mxu0
  %v1864 = vadd.f32 0.0, %v1863
  %1865 = vmatmul.bf16.gmra.mxu0 %v787
  %v1866 = vpop.f32.mrf.mxu0
  %v1867 = vadd.f32 0.0, %v1866
  %v1868 = vpop.f32.mrf.mxu0
  %v1869 = vadd.f32 0.0, %v1868
  %1870 = vmatmul.bf16.gmra.mxu0 %v789
  %v1871 = vpop.f32.mrf.mxu0
  %v1872 = vadd.f32 0.0, %v1871
  %v1873 = vpop.f32.mrf.mxu0
  %v1874 = vadd.f32 0.0, %v1873
  %1875 = vmatmul.bf16.gmra.mxu0 %v791
  %v1876 = vpop.f32.mrf.mxu0
  %v1877 = vadd.f32 0.0, %v1876
  %v1878 = vpop.f32.mrf.mxu0
  %v1879 = vadd.f32 0.0, %v1878
  %1880 = vmatmul.bf16.gmra.mxu0 %v793
  %v1881 = vpop.f32.mrf.mxu0
  %v1882 = vadd.f32 0.0, %v1881
  %v1883 = vpop.f32.mrf.mxu0
  %v1884 = vadd.f32 0.0, %v1883
  %1885 = vmatmul.bf16.gmra.mxu0 %v795
  %v1886 = vpop.f32.mrf.mxu0
  %v1887 = vadd.f32 0.0, %v1886
  %v1888 = vpop.f32.mrf.mxu0
  %v1889 = vadd.f32 0.0, %v1888
  %1890 = vmatmul.bf16.gmra.mxu0 %v797
  %v1891 = vpop.f32.mrf.mxu0
  %v1892 = vadd.f32 0.0, %v1891
  %v1893 = vpop.f32.mrf.mxu0
  %v1894 = vadd.f32 0.0, %v1893
  %1895 = vmatmul.bf16.gmra.mxu0 %v799
  %v1896 = vpop.f32.mrf.mxu0
  %v1897 = vadd.f32 0.0, %v1896
  %v1898 = vpop.f32.mrf.mxu0
  %v1899 = vadd.f32 0.0, %v1898
  %1900 = vmatmul.bf16.gmra.mxu0 %v801
  %v1901 = vpop.f32.mrf.mxu0
  %v1902 = vadd.f32 0.0, %v1901
  %v1903 = vpop.f32.mrf.mxu0
  %v1904 = vadd.f32 0.0, %v1903
  %1905 = vmatmul.bf16.gmra.mxu0 %v803
  %v1906 = vpop.f32.mrf.mxu0
  %v1907 = vadd.f32 0.0, %v1906
  %v1908 = vpop.f32.mrf.mxu0
  %v1909 = vadd.f32 0.0, %v1908
  %1910 = vmatmul.bf16.gmra.mxu0 %v805
  %v1911 = vpop.f32.mrf.mxu0
  %v1912 = vadd.f32 0.0, %v1911
  %v1913 = vpop.f32.mrf.mxu0
  %v1914 = vadd.f32 0.0, %v1913
  %1915 = vmatmul.bf16.gmra.mxu0 %v807
  %v1916 = vpop.f32.mrf.mxu0
  %v1917 = vadd.f32 0.0, %v1916
  %v1918 = vpop.f32.mrf.mxu0
  %v1919 = vadd.f32 0.0, %v1918
  %1920 = vmatmul.bf16.gmra.mxu0 %v809
  %v1921 = vpop.f32.mrf.mxu0
  %v1922 = vadd.f32 0.0, %v1921
  %v1923 = vpop.f32.mrf.mxu0
  %v1924 = vadd.f32 0.0, %v1923
  %1925 = vdwg.mxu0
  %1926 = vmatpush.bf16.msra.mxu0 %v170
  %1927 = vmatpush.bf16.msra.mxu0 %v168
  %1928 = vmatpush.bf16.msra.mxu0 %v166
  %1929 = vmatpush.bf16.msra.mxu0 %v164
  %1930 = vmatpush.bf16.msra.mxu0 %v162
  %1931 = vmatpush.bf16.msra.mxu0 %v160
  %1932 = vmatpush.bf16.msra.mxu0 %v158
  %1933 = vmatpush.bf16.msra.mxu0 %v156
  %1934 = vmatmul.bf16.gmra.mxu0 %v684
  %v1935 = vpop.f32.mrf.mxu0
  %v1936 = vadd.f32 %v1607, %v1935
  %v1937 = vpop.f32.mrf.mxu0
  %v1938 = vadd.f32 %v1609, %v1937
  %1939 = vmatmul.bf16.gmra.mxu0 %v686
  %v1940 = vpop.f32.mrf.mxu0
  %v1941 = vadd.f32 %v1612, %v1940
  %v1942 = vpop.f32.mrf.mxu0
  %v1943 = vadd.f32 %v1614, %v1942
  %1944 = vmatmul.bf16.gmra.mxu0 %v688
  %v1945 = vpop.f32.mrf.mxu0
  %v1946 = vadd.f32 %v1617, %v1945
  %v1947 = vpop.f32.mrf.mxu0
  %v1948 = vadd.f32 %v1619, %v1947
  %1949 = vmatmul.bf16.gmra.mxu0 %v690
  %v1950 = vpop.f32.mrf.mxu0
  %v1951 = vadd.f32 %v1622, %v1950
  %v1952 = vpop.f32.mrf.mxu0
  %v1953 = vadd.f32 %v1624, %v1952
  %1954 = vmatmul.bf16.gmra.mxu0 %v692
  %v1955 = vpop.f32.mrf.mxu0
  %v1956 = vadd.f32 %v1627, %v1955
  %v1957 = vpop.f32.mrf.mxu0
  %v1958 = vadd.f32 %v1629, %v1957
  %1959 = vmatmul.bf16.gmra.mxu0 %v694
  %v1960 = vpop.f32.mrf.mxu0
  %v1961 = vadd.f32 %v1632, %v1960
  %v1962 = vpop.f32.mrf.mxu0
  %v1963 = vadd.f32 %v1634, %v1962
  %1964 = vmatmul.bf16.gmra.mxu0 %v696
  %v1965 = vpop.f32.mrf.mxu0
  %v1966 = vadd.f32 %v1637, %v1965
  %v1967 = vpop.f32.mrf.mxu0
  %v1968 = vadd.f32 %v1639, %v1967
  %1969 = vmatmul.bf16.gmra.mxu0 %v698
  %v1970 = vpop.f32.mrf.mxu0
  %v1971 = vadd.f32 %v1642, %v1970
  %v1972 = vpop.f32.mrf.mxu0
  %v1973 = vadd.f32 %v1644, %v1972
  %1974 = vmatmul.bf16.gmra.mxu0 %v700
  %v1975 = vpop.f32.mrf.mxu0
  %v1976 = vadd.f32 %v1647, %v1975
  %v1977 = vpop.f32.mrf.mxu0
  %v1978 = vadd.f32 %v1649, %v1977
  %1979 = vmatmul.bf16.gmra.mxu0 %v702
  %v1980 = vpop.f32.mrf.mxu0
  %v1981 = vadd.f32 %v1652, %v1980
  %v1982 = vpop.f32.mrf.mxu0
  %v1983 = vadd.f32 %v1654, %v1982
  %1984 = vmatmul.bf16.gmra.mxu0 %v704
  %v1985 = vpop.f32.mrf.mxu0
  %v1986 = vadd.f32 %v1657, %v1985
  %v1987 = vpop.f32.mrf.mxu0
  %v1988 = vadd.f32 %v1659, %v1987
  %1989 = vmatmul.bf16.gmra.mxu0 %v706
  %v1990 = vpop.f32.mrf.mxu0
  %v1991 = vadd.f32 %v1662, %v1990
  %v1992 = vpop.f32.mrf.mxu0
  %v1993 = vadd.f32 %v1664, %v1992
  %1994 = vmatmul.bf16.gmra.mxu0 %v708
  %v1995 = vpop.f32.mrf.mxu0
  %v1996 = vadd.f32 %v1667, %v1995
  %v1997 = vpop.f32.mrf.mxu0
  %v1998 = vadd.f32 %v1669, %v1997
  %1999 = vmatmul.bf16.gmra.mxu0 %v710
  %v2000 = vpop.f32.mrf.mxu0
  %v2001 = vadd.f32 %v1672, %v2000
  %v2002 = vpop.f32.mrf.mxu0
  %v2003 = vadd.f32 %v1674, %v2002
  %2004 = vmatmul.bf16.gmra.mxu0 %v712
  %v2005 = vpop.f32.mrf.mxu0
  %v2006 = vadd.f32 %v1677, %v2005
  %v2007 = vpop.f32.mrf.mxu0
  %v2008 = vadd.f32 %v1679, %v2007
  %2009 = vmatmul.bf16.gmra.mxu0 %v714
  %v2010 = vpop.f32.mrf.mxu0
  %v2011 = vadd.f32 %v1682, %v2010
  %v2012 = vpop.f32.mrf.mxu0
  %v2013 = vadd.f32 %v1684, %v2012
  %2014 = vmatmul.bf16.gmra.mxu0 %v716
  %v2015 = vpop.f32.mrf.mxu0
  %v2016 = vadd.f32 %v1687, %v2015
  %v2017 = vpop.f32.mrf.mxu0
  %v2018 = vadd.f32 %v1689, %v2017
  %2019 = vmatmul.bf16.gmra.mxu0 %v718
  %v2020 = vpop.f32.mrf.mxu0
  %v2021 = vadd.f32 %v1692, %v2020
  %v2022 = vpop.f32.mrf.mxu0
  %v2023 = vadd.f32 %v1694, %v2022
  %2024 = vmatmul.bf16.gmra.mxu0 %v720
  %v2025 = vpop.f32.mrf.mxu0
  %v2026 = vadd.f32 %v1697, %v2025
  %v2027 = vpop.f32.mrf.mxu0
  %v2028 = vadd.f32 %v1699, %v2027
  %2029 = vmatmul.bf16.gmra.mxu0 %v722
  %v2030 = vpop.f32.mrf.mxu0
  %v2031 = vadd.f32 %v1702, %v2030
  %v2032 = vpop.f32.mrf.mxu0
  %v2033 = vadd.f32 %v1704, %v2032
  %2034 = vmatmul.bf16.gmra.mxu0 %v724
  %v2035 = vpop.f32.mrf.mxu0
  %v2036 = vadd.f32 %v1707, %v2035
  %v2037 = vpop.f32.mrf.mxu0
  %v2038 = vadd.f32 %v1709, %v2037
  %2039 = vmatmul.bf16.gmra.mxu0 %v726
  %v2040 = vpop.f32.mrf.mxu0
  %v2041 = vadd.f32 %v1712, %v2040
  %v2042 = vpop.f32.mrf.mxu0
  %v2043 = vadd.f32 %v1714, %v2042
  %2044 = vmatmul.bf16.gmra.mxu0 %v728
  %v2045 = vpop.f32.mrf.mxu0
  %v2046 = vadd.f32 %v1717, %v2045
  %v2047 = vpop.f32.mrf.mxu0
  %v2048 = vadd.f32 %v1719, %v2047
  %2049 = vmatmul.bf16.gmra.mxu0 %v730
  %v2050 = vpop.f32.mrf.mxu0
  %v2051 = vadd.f32 %v1722, %v2050
  %v2052 = vpop.f32.mrf.mxu0
  %v2053 = vadd.f32 %v1724, %v2052
  %2054 = vmatmul.bf16.gmra.mxu0 %v732
  %v2055 = vpop.f32.mrf.mxu0
  %v2056 = vadd.f32 %v1727, %v2055
  %v2057 = vpop.f32.mrf.mxu0
  %v2058 = vadd.f32 %v1729, %v2057
  %2059 = vmatmul.bf16.gmra.mxu0 %v734
  %v2060 = vpop.f32.mrf.mxu0
  %v2061 = vadd.f32 %v1732, %v2060
  %v2062 = vpop.f32.mrf.mxu0
  %v2063 = vadd.f32 %v1734, %v2062
  %2064 = vmatmul.bf16.gmra.mxu0 %v736
  %v2065 = vpop.f32.mrf.mxu0
  %v2066 = vadd.f32 %v1737, %v2065
  %v2067 = vpop.f32.mrf.mxu0
  %v2068 = vadd.f32 %v1739, %v2067
  %2069 = vmatmul.bf16.gmra.mxu0 %v738
  %v2070 = vpop.f32.mrf.mxu0
  %v2071 = vadd.f32 %v1742, %v2070
  %v2072 = vpop.f32.mrf.mxu0
  %v2073 = vadd.f32 %v1744, %v2072
  %2074 = vmatmul.bf16.gmra.mxu0 %v740
  %v2075 = vpop.f32.mrf.mxu0
  %v2076 = vadd.f32 %v1747, %v2075
  %v2077 = vpop.f32.mrf.mxu0
  %v2078 = vadd.f32 %v1749, %v2077
  %2079 = vmatmul.bf16.gmra.mxu0 %v742
  %v2080 = vpop.f32.mrf.mxu0
  %v2081 = vadd.f32 %v1752, %v2080
  %v2082 = vpop.f32.mrf.mxu0
  %v2083 = vadd.f32 %v1754, %v2082
  %2084 = vmatmul.bf16.gmra.mxu0 %v744
  %v2085 = vpop.f32.mrf.mxu0
  %v2086 = vadd.f32 %v1757, %v2085
  %v2087 = vpop.f32.mrf.mxu0
  %v2088 = vadd.f32 %v1759, %v2087
  %2089 = vmatmul.bf16.gmra.mxu0 %v746
  %v2090 = vpop.f32.mrf.mxu0
  %v2091 = vadd.f32 %v1762, %v2090
  %v2092 = vpop.f32.mrf.mxu0
  %v2093 = vadd.f32 %v1764, %v2092
  %2094 = vmatmul.bf16.gmra.mxu0 %v748
  %v2095 = vpop.f32.mrf.mxu0
  %v2096 = vadd.f32 %v1767, %v2095
  %v2097 = vpop.f32.mrf.mxu0
  %v2098 = vadd.f32 %v1769, %v2097
  %2099 = vmatmul.bf16.gmra.mxu0 %v750
  %v2100 = vpop.f32.mrf.mxu0
  %v2101 = vadd.f32 %v1772, %v2100
  %v2102 = vpop.f32.mrf.mxu0
  %v2103 = vadd.f32 %v1774, %v2102
  %2104 = vmatmul.bf16.gmra.mxu0 %v752
  %v2105 = vpop.f32.mrf.mxu0
  %v2106 = vadd.f32 %v1777, %v2105
  %v2107 = vpop.f32.mrf.mxu0
  %v2108 = vadd.f32 %v1779, %v2107
  %2109 = vmatmul.bf16.gmra.mxu0 %v754
  %v2110 = vpop.f32.mrf.mxu0
  %v2111 = vadd.f32 %v1782, %v2110
  %v2112 = vpop.f32.mrf.mxu0
  %v2113 = vadd.f32 %v1784, %v2112
  %2114 = vmatmul.bf16.gmra.mxu0 %v756
  %v2115 = vpop.f32.mrf.mxu0
  %v2116 = vadd.f32 %v1787, %v2115
  %v2117 = vpop.f32.mrf.mxu0
  %v2118 = vadd.f32 %v1789, %v2117
  %2119 = vmatmul.bf16.gmra.mxu0 %v758
  %v2120 = vpop.f32.mrf.mxu0
  %v2121 = vadd.f32 %v1792, %v2120
  %v2122 = vpop.f32.mrf.mxu0
  %v2123 = vadd.f32 %v1794, %v2122
  %2124 = vmatmul.bf16.gmra.mxu0 %v760
  %v2125 = vpop.f32.mrf.mxu0
  %v2126 = vadd.f32 %v1797, %v2125
  %v2127 = vpop.f32.mrf.mxu0
  %v2128 = vadd.f32 %v1799, %v2127
  %2129 = vmatmul.bf16.gmra.mxu0 %v762
  %v2130 = vpop.f32.mrf.mxu0
  %v2131 = vadd.f32 %v1802, %v2130
  %v2132 = vpop.f32.mrf.mxu0
  %v2133 = vadd.f32 %v1804, %v2132
  %2134 = vmatmul.bf16.gmra.mxu0 %v764
  %v2135 = vpop.f32.mrf.mxu0
  %v2136 = vadd.f32 %v1807, %v2135
  %v2137 = vpop.f32.mrf.mxu0
  %v2138 = vadd.f32 %v1809, %v2137
  %2139 = vmatmul.bf16.gmra.mxu0 %v766
  %v2140 = vpop.f32.mrf.mxu0
  %v2141 = vadd.f32 %v1812, %v2140
  %v2142 = vpop.f32.mrf.mxu0
  %v2143 = vadd.f32 %v1814, %v2142
  %2144 = vmatmul.bf16.gmra.mxu0 %v768
  %v2145 = vpop.f32.mrf.mxu0
  %v2146 = vadd.f32 %v1817, %v2145
  %v2147 = vpop.f32.mrf.mxu0
  %v2148 = vadd.f32 %v1819, %v2147
  %2149 = vmatmul.bf16.gmra.mxu0 %v770
  %v2150 = vpop.f32.mrf.mxu0
  %v2151 = vadd.f32 %v1822, %v2150
  %v2152 = vpop.f32.mrf.mxu0
  %v2153 = vadd.f32 %v1824, %v2152
  %2154 = vmatmul.bf16.gmra.mxu0 %v772
  %v2155 = vpop.f32.mrf.mxu0
  %v2156 = vadd.f32 %v1827, %v2155
  %v2157 = vpop.f32.mrf.mxu0
  %v2158 = vadd.f32 %v1829, %v2157
  %2159 = vmatmul.bf16.gmra.mxu0 %v774
  %v2160 = vpop.f32.mrf.mxu0
  %v2161 = vadd.f32 %v1832, %v2160
  %v2162 = vpop.f32.mrf.mxu0
  %v2163 = vadd.f32 %v1834, %v2162
  %2164 = vmatmul.bf16.gmra.mxu0 %v776
  %v2165 = vpop.f32.mrf.mxu0
  %v2166 = vadd.f32 %v1837, %v2165
  %v2167 = vpop.f32.mrf.mxu0
  %v2168 = vadd.f32 %v1839, %v2167
  %2169 = vmatmul.bf16.gmra.mxu0 %v778
  %v2170 = vpop.f32.mrf.mxu0
  %v2171 = vadd.f32 %v1842, %v2170
  %v2172 = vpop.f32.mrf.mxu0
  %v2173 = vadd.f32 %v1844, %v2172
  %2174 = vmatmul.bf16.gmra.mxu0 %v780
  %v2175 = vpop.f32.mrf.mxu0
  %v2176 = vadd.f32 %v1847, %v2175
  %v2177 = vpop.f32.mrf.mxu0
  %v2178 = vadd.f32 %v1849, %v2177
  %2179 = vmatmul.bf16.gmra.mxu0 %v782
  %v2180 = vpop.f32.mrf.mxu0
  %v2181 = vadd.f32 %v1852, %v2180
  %v2182 = vpop.f32.mrf.mxu0
  %v2183 = vadd.f32 %v1854, %v2182
  %2184 = vmatmul.bf16.gmra.mxu0 %v784
  %v2185 = vpop.f32.mrf.mxu0
  %v2186 = vadd.f32 %v1857, %v2185
  %v2187 = vpop.f32.mrf.mxu0
  %v2188 = vadd.f32 %v1859, %v2187
  %2189 = vmatmul.bf16.gmra.mxu0 %v786
  %v2190 = vpop.f32.mrf.mxu0
  %v2191 = vadd.f32 %v1862, %v2190
  %v2192 = vpop.f32.mrf.mxu0
  %v2193 = vadd.f32 %v1864, %v2192
  %2194 = vmatmul.bf16.gmra.mxu0 %v788
  %v2195 = vpop.f32.mrf.mxu0
  %v2196 = vadd.f32 %v1867, %v2195
  %v2197 = vpop.f32.mrf.mxu0
  %v2198 = vadd.f32 %v1869, %v2197
  %2199 = vmatmul.bf16.gmra.mxu0 %v790
  %v2200 = vpop.f32.mrf.mxu0
  %v2201 = vadd.f32 %v1872, %v2200
  %v2202 = vpop.f32.mrf.mxu0
  %v2203 = vadd.f32 %v1874, %v2202
  %2204 = vmatmul.bf16.gmra.mxu0 %v792
  %v2205 = vpop.f32.mrf.mxu0
  %v2206 = vadd.f32 %v1877, %v2205
  %v2207 = vpop.f32.mrf.mxu0
  %v2208 = vadd.f32 %v1879, %v2207
  %2209 = vmatmul.bf16.gmra.mxu0 %v794
  %v2210 = vpop.f32.mrf.mxu0
  %v2211 = vadd.f32 %v1882, %v2210
  %v2212 = vpop.f32.mrf.mxu0
  %v2213 = vadd.f32 %v1884, %v2212
  %2214 = vmatmul.bf16.gmra.mxu0 %v796
  %v2215 = vpop.f32.mrf.mxu0
  %v2216 = vadd.f32 %v1887, %v2215
  %v2217 = vpop.f32.mrf.mxu0
  %v2218 = vadd.f32 %v1889, %v2217
  %2219 = vmatmul.bf16.gmra.mxu0 %v798
  %v2220 = vpop.f32.mrf.mxu0
  %v2221 = vadd.f32 %v1892, %v2220
  %v2222 = vpop.f32.mrf.mxu0
  %v2223 = vadd.f32 %v1894, %v2222
  %2224 = vmatmul.bf16.gmra.mxu0 %v800
  %v2225 = vpop.f32.mrf.mxu0
  %v2226 = vadd.f32 %v1897, %v2225
  %v2227 = vpop.f32.mrf.mxu0
  %v2228 = vadd.f32 %v1899, %v2227
  %2229 = vmatmul.bf16.gmra.mxu0 %v802
  %v2230 = vpop.f32.mrf.mxu0
  %v2231 = vadd.f32 %v1902, %v2230
  %v2232 = vpop.f32.mrf.mxu0
  %v2233 = vadd.f32 %v1904, %v2232
  %2234 = vmatmul.bf16.gmra.mxu0 %v804
  %v2235 = vpop.f32.mrf.mxu0
  %v2236 = vadd.f32 %v1907, %v2235
  %v2237 = vpop.f32.mrf.mxu0
  %v2238 = vadd.f32 %v1909, %v2237
  %2239 = vmatmul.bf16.gmra.mxu0 %v806
  %v2240 = vpop.f32.mrf.mxu0
  %v2241 = vadd.f32 %v1912, %v2240
  %v2242 = vpop.f32.mrf.mxu0
  %v2243 = vadd.f32 %v1914, %v2242
  %2244 = vmatmul.bf16.gmra.mxu0 %v808
  %v2245 = vpop.f32.mrf.mxu0
  %v2246 = vadd.f32 %v1917, %v2245
  %v2247 = vpop.f32.mrf.mxu0
  %v2248 = vadd.f32 %v1919, %v2247
  %2249 = vmatmul.bf16.gmra.mxu0 %v810
  %v2250 = vpop.f32.mrf.mxu0
  %v2251 = vadd.f32 %v1922, %v2250
  %v2252 = vpop.f32.mrf.mxu0
  %v2253 = vadd.f32 %v1924, %v2252
  %2254 = vdwg.mxu0
  %2255 = vst [vmem:[%s2] sm:$0xff] %v1278
  %vm2256 = vcmask 556032
  %2257 = vst.msk [vmem:[%s2 + $0x8] sm:$0xff] %vm2256, %v1936
  %2258 = vst [vmem:[%s2 + $0x10] sm:$0xff] %v1280
  %2259 = vst.msk [vmem:[%s2 + $0x18] sm:$0xff] %vm2256, %v1938
  %2260 = vst [vmem:[%s2 + $0x20] sm:$0xff] %v1283
  %2261 = vst.msk [vmem:[%s2 + $0x28] sm:$0xff] %vm2256, %v1941
  %2262 = vst [vmem:[%s2 + $0x30] sm:$0xff] %v1285
  %2263 = vst.msk [vmem:[%s2 + $0x38] sm:$0xff] %vm2256, %v1943
  %2264 = vst [vmem:[%s2 + $0x40] sm:$0xff] %v1288
  %2265 = vst.msk [vmem:[%s2 + $0x48] sm:$0xff] %vm2256, %v1946
  %2266 = vst [vmem:[%s2 + $0x50] sm:$0xff] %v1290
  %2267 = vst.msk [vmem:[%s2 + $0x58] sm:$0xff] %vm2256, %v1948
  %2268 = vst [vmem:[%s2 + $0x60] sm:$0xff] %v1293
  %2269 = vst.msk [vmem:[%s2 + $0x68] sm:$0xff] %vm2256, %v1951
  %2270 = vst [vmem:[%s2 + $0x70] sm:$0xff] %v1295
  %2271 = vst.msk [vmem:[%s2 + $0x78] sm:$0xff] %vm2256, %v1953
  %2272 = vst [vmem:[%s2 + $0x80] sm:$0xff] %v1298
  %2273 = vst.msk [vmem:[%s2 + $0x88] sm:$0xff] %vm2256, %v1956
  %2274 = vst [vmem:[%s2 + $0x90] sm:$0xff] %v1300
  %2275 = vst.msk [vmem:[%s2 + $0x98] sm:$0xff] %vm2256, %v1958
  %2276 = vst [vmem:[%s2 + $0xa0] sm:$0xff] %v1303
  %2277 = vst.msk [vmem:[%s2 + $0xa8] sm:$0xff] %vm2256, %v1961
  %2278 = vst [vmem:[%s2 + $0xb0] sm:$0xff] %v1305
  %2279 = vst.msk [vmem:[%s2 + $0xb8] sm:$0xff] %vm2256, %v1963
  %2280 = vst [vmem:[%s2 + $0xc0] sm:$0xff] %v1308
  %2281 = vst.msk [vmem:[%s2 + $0xc8] sm:$0xff] %vm2256, %v1966
  %2282 = vst [vmem:[%s2 + $0xd0] sm:$0xff] %v1310
  %2283 = vst.msk [vmem:[%s2 + $0xd8] sm:$0xff] %vm2256, %v1968
  %2284 = vst [vmem:[%s2 + $0xe0] sm:$0xff] %v1313
  %2285 = vst.msk [vmem:[%s2 + $0xe8] sm:$0xff] %vm2256, %v1971
  %2286 = vst [vmem:[%s2 + $0xf0] sm:$0xff] %v1315
  %2287 = vst.msk [vmem:[%s2 + $0xf8] sm:$0xff] %vm2256, %v1973
  %2288 = vst [vmem:[%s2 + $0x100] sm:$0xff] %v1318
  %2289 = vst.msk [vmem:[%s2 + $0x108] sm:$0xff] %vm2256, %v1976
  %2290 = vst [vmem:[%s2 + $0x110] sm:$0xff] %v1320
  %2291 = vst.msk [vmem:[%s2 + $0x118] sm:$0xff] %vm2256, %v1978
  %2292 = vst [vmem:[%s2 + $0x120] sm:$0xff] %v1323
  %2293 = vst.msk [vmem:[%s2 + $0x128] sm:$0xff] %vm2256, %v1981
  %2294 = vst [vmem:[%s2 + $0x130] sm:$0xff] %v1325
  %2295 = vst.msk [vmem:[%s2 + $0x138] sm:$0xff] %vm2256, %v1983
  %2296 = vst [vmem:[%s2 + $0x140] sm:$0xff] %v1328
  %2297 = vst.msk [vmem:[%s2 + $0x148] sm:$0xff] %vm2256, %v1986
  %2298 = vst [vmem:[%s2 + $0x150] sm:$0xff] %v1330
  %2299 = vst.msk [vmem:[%s2 + $0x158] sm:$0xff] %vm2256, %v1988
  %2300 = vst [vmem:[%s2 + $0x160] sm:$0xff] %v1333
  %2301 = vst.msk [vmem:[%s2 + $0x168] sm:$0xff] %vm2256, %v1991
  %2302 = vst [vmem:[%s2 + $0x170] sm:$0xff] %v1335
  %2303 = vst.msk [vmem:[%s2 + $0x178] sm:$0xff] %vm2256, %v1993
  %2304 = vst [vmem:[%s2 + $0x180] sm:$0xff] %v1338
  %2305 = vst.msk [vmem:[%s2 + $0x188] sm:$0xff] %vm2256, %v1996
  %2306 = vst [vmem:[%s2 + $0x190] sm:$0xff] %v1340
  %2307 = vst.msk [vmem:[%s2 + $0x198] sm:$0xff] %vm2256, %v1998
  %2308 = vst [vmem:[%s2 + $0x1a0] sm:$0xff] %v1343
  %2309 = vst.msk [vmem:[%s2 + $0x1a8] sm:$0xff] %vm2256, %v2001
  %2310 = vst [vmem:[%s2 + $0x1b0] sm:$0xff] %v1345
  %2311 = vst.msk [vmem:[%s2 + $0x1b8] sm:$0xff] %vm2256, %v2003
  %2312 = vst [vmem:[%s2 + $0x1c0] sm:$0xff] %v1348
  %2313 = vst.msk [vmem:[%s2 + $0x1c8] sm:$0xff] %vm2256, %v2006
  %2314 = vst [vmem:[%s2 + $0x1d0] sm:$0xff] %v1350
  %2315 = vst.msk [vmem:[%s2 + $0x1d8] sm:$0xff] %vm2256, %v2008
  %2316 = vst [vmem:[%s2 + $0x1e0] sm:$0xff] %v1353
  %2317 = vst.msk [vmem:[%s2 + $0x1e8] sm:$0xff] %vm2256, %v2011
  %2318 = vst [vmem:[%s2 + $0x1f0] sm:$0xff] %v1355
  %2319 = vst.msk [vmem:[%s2 + $0x1f8] sm:$0xff] %vm2256, %v2013
  %2320 = vst [vmem:[%s2 + $0x200] sm:$0xff] %v1358
  %2321 = vst.msk [vmem:[%s2 + $0x208] sm:$0xff] %vm2256, %v2016
  %2322 = vst [vmem:[%s2 + $0x210] sm:$0xff] %v1360
  %2323 = vst.msk [vmem:[%s2 + $0x218] sm:$0xff] %vm2256, %v2018
  %2324 = vst [vmem:[%s2 + $0x220] sm:$0xff] %v1363
  %2325 = vst.msk [vmem:[%s2 + $0x228] sm:$0xff] %vm2256, %v2021
  %2326 = vst [vmem:[%s2 + $0x230] sm:$0xff] %v1365
  %2327 = vst.msk [vmem:[%s2 + $0x238] sm:$0xff] %vm2256, %v2023
  %2328 = vst [vmem:[%s2 + $0x240] sm:$0xff] %v1368
  %2329 = vst.msk [vmem:[%s2 + $0x248] sm:$0xff] %vm2256, %v2026
  %2330 = vst [vmem:[%s2 + $0x250] sm:$0xff] %v1370
  %2331 = vst.msk [vmem:[%s2 + $0x258] sm:$0xff] %vm2256, %v2028
  %2332 = vst [vmem:[%s2 + $0x260] sm:$0xff] %v1373
  %2333 = vst.msk [vmem:[%s2 + $0x268] sm:$0xff] %vm2256, %v2031
  %2334 = vst [vmem:[%s2 + $0x270] sm:$0xff] %v1375
  %2335 = vst.msk [vmem:[%s2 + $0x278] sm:$0xff] %vm2256, %v2033
  %2336 = vst [vmem:[%s2 + $0x280] sm:$0xff] %v1378
  %2337 = vst.msk [vmem:[%s2 + $0x288] sm:$0xff] %vm2256, %v2036
  %2338 = vst [vmem:[%s2 + $0x290] sm:$0xff] %v1380
  %2339 = vst.msk [vmem:[%s2 + $0x298] sm:$0xff] %vm2256, %v2038
  %2340 = vst [vmem:[%s2 + $0x2a0] sm:$0xff] %v1383
  %2341 = vst.msk [vmem:[%s2 + $0x2a8] sm:$0xff] %vm2256, %v2041
  %2342 = vst [vmem:[%s2 + $0x2b0] sm:$0xff] %v1385
  %2343 = vst.msk [vmem:[%s2 + $0x2b8] sm:$0xff] %vm2256, %v2043
  %2344 = vst [vmem:[%s2 + $0x2c0] sm:$0xff] %v1388
  %2345 = vst.msk [vmem:[%s2 + $0x2c8] sm:$0xff] %vm2256, %v2046
  %2346 = vst [vmem:[%s2 + $0x2d0] sm:$0xff] %v1390
  %2347 = vst.msk [vmem:[%s2 + $0x2d8] sm:$0xff] %vm2256, %v2048
  %2348 = vst [vmem:[%s2 + $0x2e0] sm:$0xff] %v1393
  %2349 = vst.msk [vmem:[%s2 + $0x2e8] sm:$0xff] %vm2256, %v2051
  %2350 = vst [vmem:[%s2 + $0x2f0] sm:$0xff] %v1395
  %2351 = vst.msk [vmem:[%s2 + $0x2f8] sm:$0xff] %vm2256, %v2053
  %2352 = vst [vmem:[%s2 + $0x300] sm:$0xff] %v1398
  %2353 = vst.msk [vmem:[%s2 + $0x308] sm:$0xff] %vm2256, %v2056
  %2354 = vst [vmem:[%s2 + $0x310] sm:$0xff] %v1400
  %2355 = vst.msk [vmem:[%s2 + $0x318] sm:$0xff] %vm2256, %v2058
  %2356 = vst [vmem:[%s2 + $0x320] sm:$0xff] %v1403
  %2357 = vst.msk [vmem:[%s2 + $0x328] sm:$0xff] %vm2256, %v2061
  %2358 = vst [vmem:[%s2 + $0x330] sm:$0xff] %v1405
  %2359 = vst.msk [vmem:[%s2 + $0x338] sm:$0xff] %vm2256, %v2063
  %2360 = vst [vmem:[%s2 + $0x340] sm:$0xff] %v1408
  %2361 = vst.msk [vmem:[%s2 + $0x348] sm:$0xff] %vm2256, %v2066
  %2362 = vst [vmem:[%s2 + $0x350] sm:$0xff] %v1410
  %2363 = vst.msk [vmem:[%s2 + $0x358] sm:$0xff] %vm2256, %v2068
  %2364 = vst [vmem:[%s2 + $0x360] sm:$0xff] %v1413
  %2365 = vst.msk [vmem:[%s2 + $0x368] sm:$0xff] %vm2256, %v2071
  %2366 = vst [vmem:[%s2 + $0x370] sm:$0xff] %v1415
  %2367 = vst.msk [vmem:[%s2 + $0x378] sm:$0xff] %vm2256, %v2073
  %2368 = vst [vmem:[%s2 + $0x380] sm:$0xff] %v1418
  %2369 = vst.msk [vmem:[%s2 + $0x388] sm:$0xff] %vm2256, %v2076
  %2370 = vst [vmem:[%s2 + $0x390] sm:$0xff] %v1420
  %2371 = vst.msk [vmem:[%s2 + $0x398] sm:$0xff] %vm2256, %v2078
  %2372 = vst [vmem:[%s2 + $0x3a0] sm:$0xff] %v1423
  %2373 = vst.msk [vmem:[%s2 + $0x3a8] sm:$0xff] %vm2256, %v2081
  %2374 = vst [vmem:[%s2 + $0x3b0] sm:$0xff] %v1425
  %2375 = vst.msk [vmem:[%s2 + $0x3b8] sm:$0xff] %vm2256, %v2083
  %2376 = vst [vmem:[%s2 + $0x3c0] sm:$0xff] %v1428
  %2377 = vst.msk [vmem:[%s2 + $0x3c8] sm:$0xff] %vm2256, %v2086
  %2378 = vst [vmem:[%s2 + $0x3d0] sm:$0xff] %v1430
  %2379 = vst.msk [vmem:[%s2 + $0x3d8] sm:$0xff] %vm2256, %v2088
  %2380 = vst [vmem:[%s2 + $0x3e0] sm:$0xff] %v1433
  %2381 = vst.msk [vmem:[%s2 + $0x3e8] sm:$0xff] %vm2256, %v2091
  %2382 = vst [vmem:[%s2 + $0x3f0] sm:$0xff] %v1435
  %2383 = vst.msk [vmem:[%s2 + $0x3f8] sm:$0xff] %vm2256, %v2093
  %2384 = vst [vmem:[%s2 + $0x400] sm:$0xff] %v1438
  %2385 = vst.msk [vmem:[%s2 + $0x408] sm:$0xff] %vm2256, %v2096
  %2386 = vst [vmem:[%s2 + $0x410] sm:$0xff] %v1440
  %2387 = vst.msk [vmem:[%s2 + $0x418] sm:$0xff] %vm2256, %v2098
  %2388 = vst [vmem:[%s2 + $0x420] sm:$0xff] %v1443
  %2389 = vst.msk [vmem:[%s2 + $0x428] sm:$0xff] %vm2256, %v2101
  %2390 = vst [vmem:[%s2 + $0x430] sm:$0xff] %v1445
  %2391 = vst.msk [vmem:[%s2 + $0x438] sm:$0xff] %vm2256, %v2103
  %2392 = vst [vmem:[%s2 + $0x440] sm:$0xff] %v1448
  %2393 = vst.msk [vmem:[%s2 + $0x448] sm:$0xff] %vm2256, %v2106
  %2394 = vst [vmem:[%s2 + $0x450] sm:$0xff] %v1450
  %2395 = vst.msk [vmem:[%s2 + $0x458] sm:$0xff] %vm2256, %v2108
  %2396 = vst [vmem:[%s2 + $0x460] sm:$0xff] %v1453
  %2397 = vst.msk [vmem:[%s2 + $0x468] sm:$0xff] %vm2256, %v2111
  %2398 = vst [vmem:[%s2 + $0x470] sm:$0xff] %v1455
  %2399 = vst.msk [vmem:[%s2 + $0x478] sm:$0xff] %vm2256, %v2113
  %2400 = vst [vmem:[%s2 + $0x480] sm:$0xff] %v1458
  %2401 = vst.msk [vmem:[%s2 + $0x488] sm:$0xff] %vm2256, %v2116
  %2402 = vst [vmem:[%s2 + $0x490] sm:$0xff] %v1460
  %2403 = vst.msk [vmem:[%s2 + $0x498] sm:$0xff] %vm2256, %v2118
  %2404 = vst [vmem:[%s2 + $0x4a0] sm:$0xff] %v1463
  %2405 = vst.msk [vmem:[%s2 + $0x4a8] sm:$0xff] %vm2256, %v2121
  %2406 = vst [vmem:[%s2 + $0x4b0] sm:$0xff] %v1465
  %2407 = vst.msk [vmem:[%s2 + $0x4b8] sm:$0xff] %vm2256, %v2123
  %2408 = vst [vmem:[%s2 + $0x4c0] sm:$0xff] %v1468
  %2409 = vst.msk [vmem:[%s2 + $0x4c8] sm:$0xff] %vm2256, %v2126
  %2410 = vst [vmem:[%s2 + $0x4d0] sm:$0xff] %v1470
  %2411 = vst.msk [vmem:[%s2 + $0x4d8] sm:$0xff] %vm2256, %v2128
  %2412 = vst [vmem:[%s2 + $0x4e0] sm:$0xff] %v1473
  %2413 = vst.msk [vmem:[%s2 + $0x4e8] sm:$0xff] %vm2256, %v2131
  %2414 = vst [vmem:[%s2 + $0x4f0] sm:$0xff] %v1475
  %2415 = vst.msk [vmem:[%s2 + $0x4f8] sm:$0xff] %vm2256, %v2133
  %2416 = vst [vmem:[%s2 + $0x500] sm:$0xff] %v1478
  %2417 = vst.msk [vmem:[%s2 + $0x508] sm:$0xff] %vm2256, %v2136
  %2418 = vst [vmem:[%s2 + $0x510] sm:$0xff] %v1480
  %2419 = vst.msk [vmem:[%s2 + $0x518] sm:$0xff] %vm2256, %v2138
  %2420 = vst [vmem:[%s2 + $0x520] sm:$0xff] %v1483
  %2421 = vst.msk [vmem:[%s2 + $0x528] sm:$0xff] %vm2256, %v2141
  %2422 = vst [vmem:[%s2 + $0x530] sm:$0xff] %v1485
  %2423 = vst.msk [vmem:[%s2 + $0x538] sm:$0xff] %vm2256, %v2143
  %2424 = vst [vmem:[%s2 + $0x540] sm:$0xff] %v1488
  %2425 = vst.msk [vmem:[%s2 + $0x548] sm:$0xff] %vm2256, %v2146
  %2426 = vst [vmem:[%s2 + $0x550] sm:$0xff] %v1490
  %2427 = vst.msk [vmem:[%s2 + $0x558] sm:$0xff] %vm2256, %v2148
  %2428 = vst [vmem:[%s2 + $0x560] sm:$0xff] %v1493
  %2429 = vst.msk [vmem:[%s2 + $0x568] sm:$0xff] %vm2256, %v2151
  %2430 = vst [vmem:[%s2 + $0x570] sm:$0xff] %v1495
  %2431 = vst.msk [vmem:[%s2 + $0x578] sm:$0xff] %vm2256, %v2153
  %2432 = vst [vmem:[%s2 + $0x580] sm:$0xff] %v1498
  %2433 = vst.msk [vmem:[%s2 + $0x588] sm:$0xff] %vm2256, %v2156
  %2434 = vst [vmem:[%s2 + $0x590] sm:$0xff] %v1500
  %2435 = vst.msk [vmem:[%s2 + $0x598] sm:$0xff] %vm2256, %v2158
  %2436 = vst [vmem:[%s2 + $0x5a0] sm:$0xff] %v1503
  %2437 = vst.msk [vmem:[%s2 + $0x5a8] sm:$0xff] %vm2256, %v2161
  %2438 = vst [vmem:[%s2 + $0x5b0] sm:$0xff] %v1505
  %2439 = vst.msk [vmem:[%s2 + $0x5b8] sm:$0xff] %vm2256, %v2163
  %2440 = vst [vmem:[%s2 + $0x5c0] sm:$0xff] %v1508
  %2441 = vst.msk [vmem:[%s2 + $0x5c8] sm:$0xff] %vm2256, %v2166
  %2442 = vst [vmem:[%s2 + $0x5d0] sm:$0xff] %v1510
  %2443 = vst.msk [vmem:[%s2 + $0x5d8] sm:$0xff] %vm2256, %v2168
  %2444 = vst [vmem:[%s2 + $0x5e0] sm:$0xff] %v1513
  %2445 = vst.msk [vmem:[%s2 + $0x5e8] sm:$0xff] %vm2256, %v2171
  %2446 = vst [vmem:[%s2 + $0x5f0] sm:$0xff] %v1515
  %2447 = vst.msk [vmem:[%s2 + $0x5f8] sm:$0xff] %vm2256, %v2173
  %2448 = vst [vmem:[%s2 + $0x600] sm:$0xff] %v1518
  %2449 = vst.msk [vmem:[%s2 + $0x608] sm:$0xff] %vm2256, %v2176
  %2450 = vst [vmem:[%s2 + $0x610] sm:$0xff] %v1520
  %2451 = vst.msk [vmem:[%s2 + $0x618] sm:$0xff] %vm2256, %v2178
  %2452 = vst [vmem:[%s2 + $0x620] sm:$0xff] %v1523
  %2453 = vst.msk [vmem:[%s2 + $0x628] sm:$0xff] %vm2256, %v2181
  %2454 = vst [vmem:[%s2 + $0x630] sm:$0xff] %v1525
  %2455 = vst.msk [vmem:[%s2 + $0x638] sm:$0xff] %vm2256, %v2183
  %2456 = vst [vmem:[%s2 + $0x640] sm:$0xff] %v1528
  %2457 = vst.msk [vmem:[%s2 + $0x648] sm:$0xff] %vm2256, %v2186
  %2458 = vst [vmem:[%s2 + $0x650] sm:$0xff] %v1530
  %2459 = vst.msk [vmem:[%s2 + $0x658] sm:$0xff] %vm2256, %v2188
  %2460 = vst [vmem:[%s2 + $0x660] sm:$0xff] %v1533
  %2461 = vst.msk [vmem:[%s2 + $0x668] sm:$0xff] %vm2256, %v2191
  %2462 = vst [vmem:[%s2 + $0x670] sm:$0xff] %v1535
  %2463 = vst.msk [vmem:[%s2 + $0x678] sm:$0xff] %vm2256, %v2193
  %2464 = vst [vmem:[%s2 + $0x680] sm:$0xff] %v1538
  %2465 = vst.msk [vmem:[%s2 + $0x688] sm:$0xff] %vm2256, %v2196
  %2466 = vst [vmem:[%s2 + $0x690] sm:$0xff] %v1540
  %2467 = vst.msk [vmem:[%s2 + $0x698] sm:$0xff] %vm2256, %v2198
  %2468 = vst [vmem:[%s2 + $0x6a0] sm:$0xff] %v1543
  %2469 = vst.msk [vmem:[%s2 + $0x6a8] sm:$0xff] %vm2256, %v2201
  %2470 = vst [vmem:[%s2 + $0x6b0] sm:$0xff] %v1545
  %2471 = vst.msk [vmem:[%s2 + $0x6b8] sm:$0xff] %vm2256, %v2203
  %2472 = vst [vmem:[%s2 + $0x6c0] sm:$0xff] %v1548
  %2473 = vst.msk [vmem:[%s2 + $0x6c8] sm:$0xff] %vm2256, %v2206
  %2474 = vst [vmem:[%s2 + $0x6d0] sm:$0xff] %v1550
  %2475 = vst.msk [vmem:[%s2 + $0x6d8] sm:$0xff] %vm2256, %v2208
  %2476 = vst [vmem:[%s2 + $0x6e0] sm:$0xff] %v1553
  %2477 = vst.msk [vmem:[%s2 + $0x6e8] sm:$0xff] %vm2256, %v2211
  %2478 = vst [vmem:[%s2 + $0x6f0] sm:$0xff] %v1555
  %2479 = vst.msk [vmem:[%s2 + $0x6f8] sm:$0xff] %vm2256, %v2213
  %2480 = vst [vmem:[%s2 + $0x700] sm:$0xff] %v1558
  %2481 = vst.msk [vmem:[%s2 + $0x708] sm:$0xff] %vm2256, %v2216
  %2482 = vst [vmem:[%s2 + $0x710] sm:$0xff] %v1560
  %2483 = vst.msk [vmem:[%s2 + $0x718] sm:$0xff] %vm2256, %v2218
  %2484 = vst [vmem:[%s2 + $0x720] sm:$0xff] %v1563
  %2485 = vst.msk [vmem:[%s2 + $0x728] sm:$0xff] %vm2256, %v2221
  %2486 = vst [vmem:[%s2 + $0x730] sm:$0xff] %v1565
  %2487 = vst.msk [vmem:[%s2 + $0x738] sm:$0xff] %vm2256, %v2223
  %2488 = vst [vmem:[%s2 + $0x740] sm:$0xff] %v1568
  %2489 = vst.msk [vmem:[%s2 + $0x748] sm:$0xff] %vm2256, %v2226
  %2490 = vst [vmem:[%s2 + $0x750] sm:$0xff] %v1570
  %2491 = vst.msk [vmem:[%s2 + $0x758] sm:$0xff] %vm2256, %v2228
  %2492 = vst [vmem:[%s2 + $0x760] sm:$0xff] %v1573
  %2493 = vst.msk [vmem:[%s2 + $0x768] sm:$0xff] %vm2256, %v2231
  %2494 = vst [vmem:[%s2 + $0x770] sm:$0xff] %v1575
  %2495 = vst.msk [vmem:[%s2 + $0x778] sm:$0xff] %vm2256, %v2233
  %2496 = vst [vmem:[%s2 + $0x780] sm:$0xff] %v1578
  %2497 = vst.msk [vmem:[%s2 + $0x788] sm:$0xff] %vm2256, %v2236
  %2498 = vst [vmem:[%s2 + $0x790] sm:$0xff] %v1580
  %2499 = vst.msk [vmem:[%s2 + $0x798] sm:$0xff] %vm2256, %v2238
  %2500 = vst [vmem:[%s2 + $0x7a0] sm:$0xff] %v1583
  %2501 = vst.msk [vmem:[%s2 + $0x7a8] sm:$0xff] %vm2256, %v2241
  %2502 = vst [vmem:[%s2 + $0x7b0] sm:$0xff] %v1585
  %2503 = vst.msk [vmem:[%s2 + $0x7b8] sm:$0xff] %vm2256, %v2243
  %2504 = vst [vmem:[%s2 + $0x7c0] sm:$0xff] %v1588
  %2505 = vst.msk [vmem:[%s2 + $0x7c8] sm:$0xff] %vm2256, %v2246
  %2506 = vst [vmem:[%s2 + $0x7d0] sm:$0xff] %v1590
  %2507 = vst.msk [vmem:[%s2 + $0x7d8] sm:$0xff] %vm2256, %v2248
  %2508 = vst [vmem:[%s2 + $0x7e0] sm:$0xff] %v1593
  %2509 = vst.msk [vmem:[%s2 + $0x7e8] sm:$0xff] %vm2256, %v2251
  %2510 = vst [vmem:[%s2 + $0x7f0] sm:$0xff] %v1595
  %2511 = vst.msk [vmem:[%s2 + $0x7f8] sm:$0xff] %vm2256, %v2253
  // Predicated region
  $region10: #{relu_conv1x1.1} parent=0 // pred_check
    _
  $region11: #{relu_conv1x1.1} parent=0 // pred_check_branch
    %2513 = sbr.rel (0) target = $region13
  $region12: #{relu_conv1x1.1} parent=0 // pred_region
    _
  $region13: #{relu_conv1x1.1} parent=0 // pred_fallthru
    _
  // Predicated region
  $region14: #{relu_conv1x1.1} parent=0 // pred_check
    _
  $region15: #{relu_conv1x1.1} parent=0 // pred_check_branch
    %2515 = sbr.rel (0) target = $region17
  $region16: #{relu_conv1x1.1} parent=0 // pred_region
    _
  $region17: #{relu_conv1x1.1} parent=0 // pred_fallthru
    _

</llo_original>
